<compile_context>
chip_gen: v7x
topology: tpu7x:2x2x1
jax: 0.10.0
libtpu: 0.0.40
codegen_flags: <defaults>
</compile_context>

<pallas_src>
import jax
import jax.numpy as jnp
from jax.experimental import pallas as pl
from jax.experimental.pallas import tpu as pltpu


def _round_up(n, m):
    return pl.cdiv(n, m) * m


def _pick_tile(batch, c_in, c_out, n_pix):
    """VMEM-aware pixel-tile size, #tiles and (optional) vmem_limit_bytes."""
    try:
        vmem_cap = int(pltpu.get_tpu_info().vmem_capacity_bytes)
    except Exception:  # pragma: no cover - conservative fallback (v7x size)
        vmem_cap = 64 * 1024 * 1024
    # f32 bytes resident in VMEM per pixel column: double-buffered in/out
    # blocks plus the live fused-layer intermediates (x, h1, h2, y per batch).
    per_col = 4 * batch * (2 * c_in + 2 * c_out + 3 * c_in + c_out)
    budget = vmem_cap // 4                      # headroom for compiler scratch
    cap = max(128, (budget // per_col) // 128 * 128)
    cap = min(cap, 32768)
    tile = min(_round_up(n_pix, 128), cap)
    # Keep >= 2 grid steps when possible so v7x's two TensorCores share work.
    if pl.cdiv(n_pix, tile) < 2 and tile >= 256:
        tile = max(128, (tile // 2) // 128 * 128)
    n_tiles = pl.cdiv(n_pix, tile)
    est = per_col * tile
    vmem_limit = None
    if est > 32 * 1024 * 1024:                  # only raise past default scoped
        vmem_limit = min(int(est * 3 // 2), vmem_cap)
    return tile, n_tiles, vmem_limit


def _make_fma_kernel(batch, c_in, c_out):
    """VPU broadcast-FMA kernel for tiny channel counts (MXU stays idle).

    Refs:
      w1_ref : SMEM [C, Cin]   conv weight with BN scale folded in (transposed)
      s1_ref : SMEM [C]        folded BN shift
      w2_ref : SMEM [c_out, C] conv2d weight (transposed)
      b2_ref : SMEM [c_out]    conv2d bias
      x_ref  : VMEM [B, Cin, T]  pixels (lane axis = pixels)
      o_ref  : VMEM [B, c_out, T]
    """
    c_hid = c_in

    def kernel(w1_ref, s1_ref, w2_ref, b2_ref, x_ref, o_ref):
        for bi in range(batch):                       # static, small batch
            xb = x_ref[bi]                            # (Cin, T)
            xs = [xb[k:k + 1, :] for k in range(c_in)]
            # layer 1: conv(k=1) + folded BN + SiLU
            h1 = []
            for c in range(c_hid):
                a = xs[0] * w1_ref[c, 0]
                for k in range(1, c_in):
                    a = a + xs[k] * w1_ref[c, k]
                a = a + s1_ref[c]
                h1.append(a * jax.nn.sigmoid(a))
            # layer 2: same weights, same shift, SiLU
            h2 = []
            for c in range(c_hid):
                a = h1[0] * w1_ref[c, 0]
                for k in range(1, c_hid):
                    a = a + h1[k] * w1_ref[c, k]
                a = a + s1_ref[c]
                h2.append(a * jax.nn.sigmoid(a))
            # layer 3: conv2d(k=1) + bias, no act
            ys = []
            for c in range(c_out):
                a = h2[0] * w2_ref[c, 0]
                for k in range(1, c_hid):
                    a = a + h2[k] * w2_ref[c, k]
                ys.append(a + b2_ref[c])
            o_ref[bi] = jnp.concatenate(ys, axis=0).astype(o_ref.dtype)

    return kernel


def _make_mxu_kernel(batch):
    """MXU path for realistic channel counts (C >= 64); weights stay in VMEM."""

    def kernel(w1_ref, s1_ref, w2_ref, b2_ref, x_ref, o_ref):
        w1 = w1_ref[...]
        s1 = s1_ref[...]
        w2 = w2_ref[...]
        b2 = b2_ref[...]
        for bi in range(batch):
            h = jnp.dot(w1, x_ref[bi], preferred_element_type=jnp.float32) + s1
            h = h * jax.nn.sigmoid(h)
            h = jnp.dot(w1, h, preferred_element_type=jnp.float32) + s1
            h = h * jax.nn.sigmoid(h)
            y = jnp.dot(w2, h, preferred_element_type=jnp.float32) + b2
            o_ref[bi] = y.astype(o_ref.dtype)

    return kernel


def detect_forward(x_nchw, params):
    """Detect.forward: conv -> conv (same weights) -> conv2d, k=1/s=1/p=1 each."""
    f32 = jnp.float32
    b, c_in, h, w = x_nchw.shape

    # Fold BN scale into the conv weight; transpose everything for [C, pixels].
    w1t = (params["conv_w"] * params["conv_scale"]).T.astype(f32)   # [C, C]
    s1v = params["conv_shift"].reshape(-1).astype(f32)              # [C]
    w2t = params["conv2d_w"].T.astype(f32)                          # [c_out, C]
    b2v = params["conv2d_b"].reshape(-1).astype(f32)                # [c_out]
    c_out = w2t.shape[0]

    # ---- interior pixels: one fused pallas_call over pixel tiles ----------
    n_pix = h * w
    x3 = x_nchw.reshape(b, c_in, n_pix).astype(f32)                 # free reshape
    tile, n_tiles, vmem_limit = _pick_tile(b, c_in, c_out, n_pix)

    if c_in >= 64:
        kernel = _make_mxu_kernel(b)
        w_specs = [
            pl.BlockSpec((c_in, c_in), lambda ti: (0, 0)),
            pl.BlockSpec((c_in, 1), lambda ti: (0, 0)),
            pl.BlockSpec((c_out, c_in), lambda ti: (0, 0)),
            pl.BlockSpec((c_out, 1), lambda ti: (0, 0)),
        ]
        w_args = (w1t, s1v.reshape(-1, 1), w2t, b2v.reshape(-1, 1))
    else:
        kernel = _make_fma_kernel(b, c_in, c_out)
        smem = pl.BlockSpec(memory_space=pltpu.MemorySpace.SMEM)
        w_specs = [smem, smem, smem, smem]
        w_args = (w1t, s1v, w2t, b2v)

    interior = pl.pallas_call(
        kernel,
        out_shape=jax.ShapeDtypeStruct((b, c_out, n_pix), f32),
        grid=(n_tiles,),
        in_specs=w_specs + [pl.BlockSpec((b, c_in, tile), lambda ti: (0, 0, ti))],
        out_specs=pl.BlockSpec((b, c_out, tile), lambda ti: (0, 0, ti)),
        compiler_params=pltpu.CompilerParams(
            dimension_semantics=("parallel",),
            vmem_limit_bytes=vmem_limit),
    )(*w_args, x3)
    interior = interior.reshape(b, c_out, h, w)

    # ---- the three zero-pad frames: ONE composite template + one set ------
    def _silu(v):
        return v * jax.nn.sigmoid(v)

    z1 = _silu(s1v)                         # zero pixel after conv layer 1
    z2 = _silu(w1t @ z1 + s1v)              # ... after conv layer 2
    ring2 = w2t @ z2 + b2v                  # innermost frame (next to interior)
    ring1 = w2t @ z1 + b2v                  # middle frame
    ring0 = b2v                             # outermost frame

    frame = jnp.broadcast_to(ring0[:, None, None], (c_out, h + 6, w + 6))
    frame = frame.at[:, 1:-1, 1:-1].set(
        jnp.broadcast_to(ring1[:, None, None], (c_out, h + 4, w + 4)))
    frame = frame.at[:, 2:-2, 2:-2].set(
        jnp.broadcast_to(ring2[:, None, None], (c_out, h + 2, w + 2)))
    y = jnp.broadcast_to(frame[None], (b, c_out, h + 6, w + 6))
    y = y.at[:, :, 3:-3, 3:-3].set(interior)
    return y


def _reference_forward(x_nchw, params):
    """Pure-JAX reference (pad -> pointwise conv -> BN fold -> SiLU, x3)."""
    def block(x, w, scale, shift, act):
        xp = jnp.pad(x, ((0, 0), (0, 0), (1, 1), (1, 1)))
        y = jnp.einsum("bchw,cd->bdhw", xp, w)
        y = y * scale[None, :, None, None] + shift[None, :, None, None]
        if act:
            y = y * jax.nn.sigmoid(y)
        return y

    x = block(x_nchw, params["conv_w"], params["conv_scale"][0],
              params["conv_shift"][0], True)
    x = block(x, params["conv_w"], params["conv_scale"][0],
              params["conv_shift"][0], True)
    x = block(x, params["conv2d_w"], jnp.ones_like(params["conv2d_b"][0]),
              params["conv2d_b"][0], False)
    return x


def make_params(key, c_in, c_out):
    """Deterministic synthetic parameters (no checkpoint load)."""
    k1, k2, k3, k4, k5, k6 = jax.random.split(key, 6)
    eps = 1e-5
    conv_w = 0.1 * jax.random.normal(k1, (c_in, c_in), jnp.float32)   # [Cin, Cout]
    gamma = 1.0 + 0.1 * jax.random.normal(k2, (c_in,), jnp.float32)
    beta = 0.05 * jax.random.normal(k3, (c_in,), jnp.float32)
    run_mean = 0.02 * jax.random.normal(k4, (c_in,), jnp.float32)
    run_var = jnp.abs(1.0 + 0.1 * jax.random.normal(k5, (c_in,), jnp.float32))
    inv_std = gamma / jnp.sqrt(run_var + eps)
    conv_scale = inv_std[None, :]                      # [1, C]
    conv_shift = (beta - run_mean * inv_std)[None, :]  # [1, C]
    conv2d_w = 0.1 * jax.random.normal(k6, (c_in, c_out), jnp.float32)
    conv2d_b = 0.01 * jnp.arange(c_out, dtype=jnp.float32)[None, :]
    return {
        "conv_w": conv_w,
        "conv_scale": conv_scale,
        "conv_shift": conv_shift,
        "conv2d_w": conv2d_w,
        "conv2d_b": conv2d_b,
    }


if __name__ == "__main__":
    key = jax.random.PRNGKey(0)
    kx, kp = jax.random.split(key)

    B, C, H, W = 2, 4, 16, 16   # input NCHW
    c_out = 8                    # Detect(c=8)

    x = jax.random.normal(kx, (B, C, H, W), jnp.float32)
    params = make_params(kp, C, c_out)

    fwd = jax.jit(detect_forward)
    out = jax.block_until_ready(fwd(x, params))
    ref = jax.block_until_ready(_reference_forward(x, params))

    assert out.shape == (B, c_out, H + 6, W + 6), out.shape
    assert jnp.allclose(out, ref, atol=1e-4, rtol=1e-4), "mismatch vs reference"
    print("KERNEL_OK")
</pallas_src>

<mosaic_0001>
module attributes {stable_mosaic.version = 11 : i64} {
  func.func @kernel(%arg0: i32, %arg1: memref<4x4xf32, #tpu.memory_space<smem>>, %arg2: memref<4xf32, #tpu.memory_space<smem>>, %arg3: memref<8x4xf32, #tpu.memory_space<smem>>, %arg4: memref<8xf32, #tpu.memory_space<smem>>, %arg5: memref<2x4x128xf32, #tpu.memory_space<vmem>>, %arg6: memref<2x8x128xf32, #tpu.memory_space<vmem>>) attributes {dimension_semantics = [#tpu.dimension_semantics<parallel>], iteration_bounds = array<i64: 2>, scalar_prefetch = 0 : i64, scratch_operands = 0 : i64, tpu.core_type = #tpu.core_type<tc>, window_params = [{transform_indices = @transform_0, window_bounds = array<i64: 4, 4>}, {transform_indices = @transform_1, window_bounds = array<i64: 4>}, {transform_indices = @transform_2, window_bounds = array<i64: 8, 4>}, {transform_indices = @transform_3, window_bounds = array<i64: 8>}, {transform_indices = @transform_4, window_bounds = array<i64: 2, 4, 128>}, {transform_indices = @transform_5, window_bounds = array<i64: 2, 8, 128>}]} {
    %c0 = arith.constant 0 : index
    %c0_0 = arith.constant 0 : index
    %c0_1 = arith.constant 0 : index
    %0 = vector.load %arg5[%c0, %c0_0, %c0_1] : memref<2x4x128xf32, #tpu.memory_space<vmem>>, vector<1x4x128xf32>
    %1 = vector.shape_cast %0 : vector<1x4x128xf32> to vector<4x128xf32>
    %2 = vector.extract_strided_slice %1 {offsets = [0, 0], sizes = [1, 128], strides = [1, 1]} : vector<4x128xf32> to vector<1x128xf32>
    %3 = vector.extract_strided_slice %1 {offsets = [1, 0], sizes = [1, 128], strides = [1, 1]} : vector<4x128xf32> to vector<1x128xf32>
    %4 = vector.extract_strided_slice %1 {offsets = [2, 0], sizes = [1, 128], strides = [1, 1]} : vector<4x128xf32> to vector<1x128xf32>
    %5 = vector.extract_strided_slice %1 {offsets = [3, 0], sizes = [1, 128], strides = [1, 1]} : vector<4x128xf32> to vector<1x128xf32>
    %c0_2 = arith.constant 0 : index
    %c0_3 = arith.constant 0 : index
    %6 = memref.load %arg1[%c0_2, %c0_3] : memref<4x4xf32, #tpu.memory_space<smem>>
    %7 = vector.broadcast %6 : f32 to vector<1x128xf32>
    %8 = arith.mulf %2, %7 : vector<1x128xf32>
    %c0_4 = arith.constant 0 : index
    %c1 = arith.constant 1 : index
    %9 = memref.load %arg1[%c0_4, %c1] : memref<4x4xf32, #tpu.memory_space<smem>>
    %10 = vector.broadcast %9 : f32 to vector<1x128xf32>
    %11 = arith.mulf %3, %10 : vector<1x128xf32>
    %12 = arith.addf %8, %11 : vector<1x128xf32>
    %c0_5 = arith.constant 0 : index
    %c2 = arith.constant 2 : index
    %13 = memref.load %arg1[%c0_5, %c2] : memref<4x4xf32, #tpu.memory_space<smem>>
    %14 = vector.broadcast %13 : f32 to vector<1x128xf32>
    %15 = arith.mulf %4, %14 : vector<1x128xf32>
    %16 = arith.addf %12, %15 : vector<1x128xf32>
    %c0_6 = arith.constant 0 : index
    %c3 = arith.constant 3 : index
    %17 = memref.load %arg1[%c0_6, %c3] : memref<4x4xf32, #tpu.memory_space<smem>>
    %18 = vector.broadcast %17 : f32 to vector<1x128xf32>
    %19 = arith.mulf %5, %18 : vector<1x128xf32>
    %20 = arith.addf %16, %19 : vector<1x128xf32>
    %c0_7 = arith.constant 0 : index
    %21 = memref.load %arg2[%c0_7] : memref<4xf32, #tpu.memory_space<smem>>
    %22 = vector.broadcast %21 : f32 to vector<1x128xf32>
    %23 = arith.addf %20, %22 : vector<1x128xf32>
    %24 = arith.negf %23 : vector<1x128xf32>
    %25 = math.exp %24 : vector<1x128xf32>
    %cst = arith.constant 1.000000e+00 : f32
    %26 = vector.broadcast %cst : f32 to vector<1x128xf32>
    %27 = arith.addf %26, %25 : vector<1x128xf32>
    %28 = arith.divf %26, %27 : vector<1x128xf32>
    %29 = arith.mulf %23, %28 : vector<1x128xf32>
    %c1_8 = arith.constant 1 : index
    %c0_9 = arith.constant 0 : index
    %30 = memref.load %arg1[%c1_8, %c0_9] : memref<4x4xf32, #tpu.memory_space<smem>>
    %31 = vector.broadcast %30 : f32 to vector<1x128xf32>
    %32 = arith.mulf %2, %31 : vector<1x128xf32>
    %c1_10 = arith.constant 1 : index
    %c1_11 = arith.constant 1 : index
    %33 = memref.load %arg1[%c1_10, %c1_11] : memref<4x4xf32, #tpu.memory_space<smem>>
    %34 = vector.broadcast %33 : f32 to vector<1x128xf32>
    %35 = arith.mulf %3, %34 : vector<1x128xf32>
    %36 = arith.addf %32, %35 : vector<1x128xf32>
    %c1_12 = arith.constant 1 : index
    %c2_13 = arith.constant 2 : index
    %37 = memref.load %arg1[%c1_12, %c2_13] : memref<4x4xf32, #tpu.memory_space<smem>>
    %38 = vector.broadcast %37 : f32 to vector<1x128xf32>
    %39 = arith.mulf %4, %38 : vector<1x128xf32>
    %40 = arith.addf %36, %39 : vector<1x128xf32>
    %c1_14 = arith.constant 1 : index
    %c3_15 = arith.constant 3 : index
    %41 = memref.load %arg1[%c1_14, %c3_15] : memref<4x4xf32, #tpu.memory_space<smem>>
    %42 = vector.broadcast %41 : f32 to vector<1x128xf32>
    %43 = arith.mulf %5, %42 : vector<1x128xf32>
    %44 = arith.addf %40, %43 : vector<1x128xf32>
    %c1_16 = arith.constant 1 : index
    %45 = memref.load %arg2[%c1_16] : memref<4xf32, #tpu.memory_space<smem>>
    %46 = vector.broadcast %45 : f32 to vector<1x128xf32>
    %47 = arith.addf %44, %46 : vector<1x128xf32>
    %48 = arith.negf %47 : vector<1x128xf32>
    %49 = math.exp %48 : vector<1x128xf32>
    %cst_17 = arith.constant 1.000000e+00 : f32
    %50 = vector.broadcast %cst_17 : f32 to vector<1x128xf32>
    %51 = arith.addf %50, %49 : vector<1x128xf32>
    %52 = arith.divf %50, %51 : vector<1x128xf32>
    %53 = arith.mulf %47, %52 : vector<1x128xf32>
    %c2_18 = arith.constant 2 : index
    %c0_19 = arith.constant 0 : index
    %54 = memref.load %arg1[%c2_18, %c0_19] : memref<4x4xf32, #tpu.memory_space<smem>>
    %55 = vector.broadcast %54 : f32 to vector<1x128xf32>
    %56 = arith.mulf %2, %55 : vector<1x128xf32>
    %c2_20 = arith.constant 2 : index
    %c1_21 = arith.constant 1 : index
    %57 = memref.load %arg1[%c2_20, %c1_21] : memref<4x4xf32, #tpu.memory_space<smem>>
    %58 = vector.broadcast %57 : f32 to vector<1x128xf32>
    %59 = arith.mulf %3, %58 : vector<1x128xf32>
    %60 = arith.addf %56, %59 : vector<1x128xf32>
    %c2_22 = arith.constant 2 : index
    %c2_23 = arith.constant 2 : index
    %61 = memref.load %arg1[%c2_22, %c2_23] : memref<4x4xf32, #tpu.memory_space<smem>>
    %62 = vector.broadcast %61 : f32 to vector<1x128xf32>
    %63 = arith.mulf %4, %62 : vector<1x128xf32>
    %64 = arith.addf %60, %63 : vector<1x128xf32>
    %c2_24 = arith.constant 2 : index
    %c3_25 = arith.constant 3 : index
    %65 = memref.load %arg1[%c2_24, %c3_25] : memref<4x4xf32, #tpu.memory_space<smem>>
    %66 = vector.broadcast %65 : f32 to vector<1x128xf32>
    %67 = arith.mulf %5, %66 : vector<1x128xf32>
    %68 = arith.addf %64, %67 : vector<1x128xf32>
    %c2_26 = arith.constant 2 : index
    %69 = memref.load %arg2[%c2_26] : memref<4xf32, #tpu.memory_space<smem>>
    %70 = vector.broadcast %69 : f32 to vector<1x128xf32>
    %71 = arith.addf %68, %70 : vector<1x128xf32>
    %72 = arith.negf %71 : vector<1x128xf32>
    %73 = math.exp %72 : vector<1x128xf32>
    %cst_27 = arith.constant 1.000000e+00 : f32
    %74 = vector.broadcast %cst_27 : f32 to vector<1x128xf32>
    %75 = arith.addf %74, %73 : vector<1x128xf32>
    %76 = arith.divf %74, %75 : vector<1x128xf32>
    %77 = arith.mulf %71, %76 : vector<1x128xf32>
    %c3_28 = arith.constant 3 : index
    %c0_29 = arith.constant 0 : index
    %78 = memref.load %arg1[%c3_28, %c0_29] : memref<4x4xf32, #tpu.memory_space<smem>>
    %79 = vector.broadcast %78 : f32 to vector<1x128xf32>
    %80 = arith.mulf %2, %79 : vector<1x128xf32>
    %c3_30 = arith.constant 3 : index
    %c1_31 = arith.constant 1 : index
    %81 = memref.load %arg1[%c3_30, %c1_31] : memref<4x4xf32, #tpu.memory_space<smem>>
    %82 = vector.broadcast %81 : f32 to vector<1x128xf32>
    %83 = arith.mulf %3, %82 : vector<1x128xf32>
    %84 = arith.addf %80, %83 : vector<1x128xf32>
    %c3_32 = arith.constant 3 : index
    %c2_33 = arith.constant 2 : index
    %85 = memref.load %arg1[%c3_32, %c2_33] : memref<4x4xf32, #tpu.memory_space<smem>>
    %86 = vector.broadcast %85 : f32 to vector<1x128xf32>
    %87 = arith.mulf %4, %86 : vector<1x128xf32>
    %88 = arith.addf %84, %87 : vector<1x128xf32>
    %c3_34 = arith.constant 3 : index
    %c3_35 = arith.constant 3 : index
    %89 = memref.load %arg1[%c3_34, %c3_35] : memref<4x4xf32, #tpu.memory_space<smem>>
    %90 = vector.broadcast %89 : f32 to vector<1x128xf32>
    %91 = arith.mulf %5, %90 : vector<1x128xf32>
    %92 = arith.addf %88, %91 : vector<1x128xf32>
    %c3_36 = arith.constant 3 : index
    %93 = memref.load %arg2[%c3_36] : memref<4xf32, #tpu.memory_space<smem>>
    %94 = vector.broadcast %93 : f32 to vector<1x128xf32>
    %95 = arith.addf %92, %94 : vector<1x128xf32>
    %96 = arith.negf %95 : vector<1x128xf32>
    %97 = math.exp %96 : vector<1x128xf32>
    %cst_37 = arith.constant 1.000000e+00 : f32
    %98 = vector.broadcast %cst_37 : f32 to vector<1x128xf32>
    %99 = arith.addf %98, %97 : vector<1x128xf32>
    %100 = arith.divf %98, %99 : vector<1x128xf32>
    %101 = arith.mulf %95, %100 : vector<1x128xf32>
    %c0_38 = arith.constant 0 : index
    %c0_39 = arith.constant 0 : index
    %102 = memref.load %arg1[%c0_38, %c0_39] : memref<4x4xf32, #tpu.memory_space<smem>>
    %103 = vector.broadcast %102 : f32 to vector<1x128xf32>
    %104 = arith.mulf %29, %103 : vector<1x128xf32>
    %c0_40 = arith.constant 0 : index
    %c1_41 = arith.constant 1 : index
    %105 = memref.load %arg1[%c0_40, %c1_41] : memref<4x4xf32, #tpu.memory_space<smem>>
    %106 = vector.broadcast %105 : f32 to vector<1x128xf32>
    %107 = arith.mulf %53, %106 : vector<1x128xf32>
    %108 = arith.addf %104, %107 : vector<1x128xf32>
    %c0_42 = arith.constant 0 : index
    %c2_43 = arith.constant 2 : index
    %109 = memref.load %arg1[%c0_42, %c2_43] : memref<4x4xf32, #tpu.memory_space<smem>>
    %110 = vector.broadcast %109 : f32 to vector<1x128xf32>
    %111 = arith.mulf %77, %110 : vector<1x128xf32>
    %112 = arith.addf %108, %111 : vector<1x128xf32>
    %c0_44 = arith.constant 0 : index
    %c3_45 = arith.constant 3 : index
    %113 = memref.load %arg1[%c0_44, %c3_45] : memref<4x4xf32, #tpu.memory_space<smem>>
    %114 = vector.broadcast %113 : f32 to vector<1x128xf32>
    %115 = arith.mulf %101, %114 : vector<1x128xf32>
    %116 = arith.addf %112, %115 : vector<1x128xf32>
    %c0_46 = arith.constant 0 : index
    %117 = memref.load %arg2[%c0_46] : memref<4xf32, #tpu.memory_space<smem>>
    %118 = vector.broadcast %117 : f32 to vector<1x128xf32>
    %119 = arith.addf %116, %118 : vector<1x128xf32>
    %120 = arith.negf %119 : vector<1x128xf32>
    %121 = math.exp %120 : vector<1x128xf32>
    %cst_47 = arith.constant 1.000000e+00 : f32
    %122 = vector.broadcast %cst_47 : f32 to vector<1x128xf32>
    %123 = arith.addf %122, %121 : vector<1x128xf32>
    %124 = arith.divf %122, %123 : vector<1x128xf32>
    %125 = arith.mulf %119, %124 : vector<1x128xf32>
    %c1_48 = arith.constant 1 : index
    %c0_49 = arith.constant 0 : index
    %126 = memref.load %arg1[%c1_48, %c0_49] : memref<4x4xf32, #tpu.memory_space<smem>>
    %127 = vector.broadcast %126 : f32 to vector<1x128xf32>
    %128 = arith.mulf %29, %127 : vector<1x128xf32>
    %c1_50 = arith.constant 1 : index
    %c1_51 = arith.constant 1 : index
    %129 = memref.load %arg1[%c1_50, %c1_51] : memref<4x4xf32, #tpu.memory_space<smem>>
    %130 = vector.broadcast %129 : f32 to vector<1x128xf32>
    %131 = arith.mulf %53, %130 : vector<1x128xf32>
    %132 = arith.addf %128, %131 : vector<1x128xf32>
    %c1_52 = arith.constant 1 : index
    %c2_53 = arith.constant 2 : index
    %133 = memref.load %arg1[%c1_52, %c2_53] : memref<4x4xf32, #tpu.memory_space<smem>>
    %134 = vector.broadcast %133 : f32 to vector<1x128xf32>
    %135 = arith.mulf %77, %134 : vector<1x128xf32>
    %136 = arith.addf %132, %135 : vector<1x128xf32>
    %c1_54 = arith.constant 1 : index
    %c3_55 = arith.constant 3 : index
    %137 = memref.load %arg1[%c1_54, %c3_55] : memref<4x4xf32, #tpu.memory_space<smem>>
    %138 = vector.broadcast %137 : f32 to vector<1x128xf32>
    %139 = arith.mulf %101, %138 : vector<1x128xf32>
    %140 = arith.addf %136, %139 : vector<1x128xf32>
    %c1_56 = arith.constant 1 : index
    %141 = memref.load %arg2[%c1_56] : memref<4xf32, #tpu.memory_space<smem>>
    %142 = vector.broadcast %141 : f32 to vector<1x128xf32>
    %143 = arith.addf %140, %142 : vector<1x128xf32>
    %144 = arith.negf %143 : vector<1x128xf32>
    %145 = math.exp %144 : vector<1x128xf32>
    %cst_57 = arith.constant 1.000000e+00 : f32
    %146 = vector.broadcast %cst_57 : f32 to vector<1x128xf32>
    %147 = arith.addf %146, %145 : vector<1x128xf32>
    %148 = arith.divf %146, %147 : vector<1x128xf32>
    %149 = arith.mulf %143, %148 : vector<1x128xf32>
    %c2_58 = arith.constant 2 : index
    %c0_59 = arith.constant 0 : index
    %150 = memref.load %arg1[%c2_58, %c0_59] : memref<4x4xf32, #tpu.memory_space<smem>>
    %151 = vector.broadcast %150 : f32 to vector<1x128xf32>
    %152 = arith.mulf %29, %151 : vector<1x128xf32>
    %c2_60 = arith.constant 2 : index
    %c1_61 = arith.constant 1 : index
    %153 = memref.load %arg1[%c2_60, %c1_61] : memref<4x4xf32, #tpu.memory_space<smem>>
    %154 = vector.broadcast %153 : f32 to vector<1x128xf32>
    %155 = arith.mulf %53, %154 : vector<1x128xf32>
    %156 = arith.addf %152, %155 : vector<1x128xf32>
    %c2_62 = arith.constant 2 : index
    %c2_63 = arith.constant 2 : index
    %157 = memref.load %arg1[%c2_62, %c2_63] : memref<4x4xf32, #tpu.memory_space<smem>>
    %158 = vector.broadcast %157 : f32 to vector<1x128xf32>
    %159 = arith.mulf %77, %158 : vector<1x128xf32>
    %160 = arith.addf %156, %159 : vector<1x128xf32>
    %c2_64 = arith.constant 2 : index
    %c3_65 = arith.constant 3 : index
    %161 = memref.load %arg1[%c2_64, %c3_65] : memref<4x4xf32, #tpu.memory_space<smem>>
    %162 = vector.broadcast %161 : f32 to vector<1x128xf32>
    %163 = arith.mulf %101, %162 : vector<1x128xf32>
    %164 = arith.addf %160, %163 : vector<1x128xf32>
    %c2_66 = arith.constant 2 : index
    %165 = memref.load %arg2[%c2_66] : memref<4xf32, #tpu.memory_space<smem>>
    %166 = vector.broadcast %165 : f32 to vector<1x128xf32>
    %167 = arith.addf %164, %166 : vector<1x128xf32>
    %168 = arith.negf %167 : vector<1x128xf32>
    %169 = math.exp %168 : vector<1x128xf32>
    %cst_67 = arith.constant 1.000000e+00 : f32
    %170 = vector.broadcast %cst_67 : f32 to vector<1x128xf32>
    %171 = arith.addf %170, %169 : vector<1x128xf32>
    %172 = arith.divf %170, %171 : vector<1x128xf32>
    %173 = arith.mulf %167, %172 : vector<1x128xf32>
    %c3_68 = arith.constant 3 : index
    %c0_69 = arith.constant 0 : index
    %174 = memref.load %arg1[%c3_68, %c0_69] : memref<4x4xf32, #tpu.memory_space<smem>>
    %175 = vector.broadcast %174 : f32 to vector<1x128xf32>
    %176 = arith.mulf %29, %175 : vector<1x128xf32>
    %c3_70 = arith.constant 3 : index
    %c1_71 = arith.constant 1 : index
    %177 = memref.load %arg1[%c3_70, %c1_71] : memref<4x4xf32, #tpu.memory_space<smem>>
    %178 = vector.broadcast %177 : f32 to vector<1x128xf32>
    %179 = arith.mulf %53, %178 : vector<1x128xf32>
    %180 = arith.addf %176, %179 : vector<1x128xf32>
    %c3_72 = arith.constant 3 : index
    %c2_73 = arith.constant 2 : index
    %181 = memref.load %arg1[%c3_72, %c2_73] : memref<4x4xf32, #tpu.memory_space<smem>>
    %182 = vector.broadcast %181 : f32 to vector<1x128xf32>
    %183 = arith.mulf %77, %182 : vector<1x128xf32>
    %184 = arith.addf %180, %183 : vector<1x128xf32>
    %c3_74 = arith.constant 3 : index
    %c3_75 = arith.constant 3 : index
    %185 = memref.load %arg1[%c3_74, %c3_75] : memref<4x4xf32, #tpu.memory_space<smem>>
    %186 = vector.broadcast %185 : f32 to vector<1x128xf32>
    %187 = arith.mulf %101, %186 : vector<1x128xf32>
    %188 = arith.addf %184, %187 : vector<1x128xf32>
    %c3_76 = arith.constant 3 : index
    %189 = memref.load %arg2[%c3_76] : memref<4xf32, #tpu.memory_space<smem>>
    %190 = vector.broadcast %189 : f32 to vector<1x128xf32>
    %191 = arith.addf %188, %190 : vector<1x128xf32>
    %192 = arith.negf %191 : vector<1x128xf32>
    %193 = math.exp %192 : vector<1x128xf32>
    %cst_77 = arith.constant 1.000000e+00 : f32
    %194 = vector.broadcast %cst_77 : f32 to vector<1x128xf32>
    %195 = arith.addf %194, %193 : vector<1x128xf32>
    %196 = arith.divf %194, %195 : vector<1x128xf32>
    %197 = arith.mulf %191, %196 : vector<1x128xf32>
    %c0_78 = arith.constant 0 : index
    %c0_79 = arith.constant 0 : index
    %198 = memref.load %arg3[%c0_78, %c0_79] : memref<8x4xf32, #tpu.memory_space<smem>>
    %199 = vector.broadcast %198 : f32 to vector<1x128xf32>
    %200 = arith.mulf %125, %199 : vector<1x128xf32>
    %c0_80 = arith.constant 0 : index
    %c1_81 = arith.constant 1 : index
    %201 = memref.load %arg3[%c0_80, %c1_81] : memref<8x4xf32, #tpu.memory_space<smem>>
    %202 = vector.broadcast %201 : f32 to vector<1x128xf32>
    %203 = arith.mulf %149, %202 : vector<1x128xf32>
    %204 = arith.addf %200, %203 : vector<1x128xf32>
    %c0_82 = arith.constant 0 : index
    %c2_83 = arith.constant 2 : index
    %205 = memref.load %arg3[%c0_82, %c2_83] : memref<8x4xf32, #tpu.memory_space<smem>>
    %206 = vector.broadcast %205 : f32 to vector<1x128xf32>
    %207 = arith.mulf %173, %206 : vector<1x128xf32>
    %208 = arith.addf %204, %207 : vector<1x128xf32>
    %c0_84 = arith.constant 0 : index
    %c3_85 = arith.constant 3 : index
    %209 = memref.load %arg3[%c0_84, %c3_85] : memref<8x4xf32, #tpu.memory_space<smem>>
    %210 = vector.broadcast %209 : f32 to vector<1x128xf32>
    %211 = arith.mulf %197, %210 : vector<1x128xf32>
    %212 = arith.addf %208, %211 : vector<1x128xf32>
    %c0_86 = arith.constant 0 : index
    %213 = memref.load %arg4[%c0_86] : memref<8xf32, #tpu.memory_space<smem>>
    %214 = vector.broadcast %213 : f32 to vector<1x128xf32>
    %215 = arith.addf %212, %214 : vector<1x128xf32>
    %c1_87 = arith.constant 1 : index
    %c0_88 = arith.constant 0 : index
    %216 = memref.load %arg3[%c1_87, %c0_88] : memref<8x4xf32, #tpu.memory_space<smem>>
    %217 = vector.broadcast %216 : f32 to vector<1x128xf32>
    %218 = arith.mulf %125, %217 : vector<1x128xf32>
    %c1_89 = arith.constant 1 : index
    %c1_90 = arith.constant 1 : index
    %219 = memref.load %arg3[%c1_89, %c1_90] : memref<8x4xf32, #tpu.memory_space<smem>>
    %220 = vector.broadcast %219 : f32 to vector<1x128xf32>
    %221 = arith.mulf %149, %220 : vector<1x128xf32>
    %222 = arith.addf %218, %221 : vector<1x128xf32>
    %c1_91 = arith.constant 1 : index
    %c2_92 = arith.constant 2 : index
    %223 = memref.load %arg3[%c1_91, %c2_92] : memref<8x4xf32, #tpu.memory_space<smem>>
    %224 = vector.broadcast %223 : f32 to vector<1x128xf32>
    %225 = arith.mulf %173, %224 : vector<1x128xf32>
    %226 = arith.addf %222, %225 : vector<1x128xf32>
    %c1_93 = arith.constant 1 : index
    %c3_94 = arith.constant 3 : index
    %227 = memref.load %arg3[%c1_93, %c3_94] : memref<8x4xf32, #tpu.memory_space<smem>>
    %228 = vector.broadcast %227 : f32 to vector<1x128xf32>
    %229 = arith.mulf %197, %228 : vector<1x128xf32>
    %230 = arith.addf %226, %229 : vector<1x128xf32>
    %c1_95 = arith.constant 1 : index
    %231 = memref.load %arg4[%c1_95] : memref<8xf32, #tpu.memory_space<smem>>
    %232 = vector.broadcast %231 : f32 to vector<1x128xf32>
    %233 = arith.addf %230, %232 : vector<1x128xf32>
    %c2_96 = arith.constant 2 : index
    %c0_97 = arith.constant 0 : index
    %234 = memref.load %arg3[%c2_96, %c0_97] : memref<8x4xf32, #tpu.memory_space<smem>>
    %235 = vector.broadcast %234 : f32 to vector<1x128xf32>
    %236 = arith.mulf %125, %235 : vector<1x128xf32>
    %c2_98 = arith.constant 2 : index
    %c1_99 = arith.constant 1 : index
    %237 = memref.load %arg3[%c2_98, %c1_99] : memref<8x4xf32, #tpu.memory_space<smem>>
    %238 = vector.broadcast %237 : f32 to vector<1x128xf32>
    %239 = arith.mulf %149, %238 : vector<1x128xf32>
    %240 = arith.addf %236, %239 : vector<1x128xf32>
    %c2_100 = arith.constant 2 : index
    %c2_101 = arith.constant 2 : index
    %241 = memref.load %arg3[%c2_100, %c2_101] : memref<8x4xf32, #tpu.memory_space<smem>>
    %242 = vector.broadcast %241 : f32 to vector<1x128xf32>
    %243 = arith.mulf %173, %242 : vector<1x128xf32>
    %244 = arith.addf %240, %243 : vector<1x128xf32>
    %c2_102 = arith.constant 2 : index
    %c3_103 = arith.constant 3 : index
    %245 = memref.load %arg3[%c2_102, %c3_103] : memref<8x4xf32, #tpu.memory_space<smem>>
    %246 = vector.broadcast %245 : f32 to vector<1x128xf32>
    %247 = arith.mulf %197, %246 : vector<1x128xf32>
    %248 = arith.addf %244, %247 : vector<1x128xf32>
    %c2_104 = arith.constant 2 : index
    %249 = memref.load %arg4[%c2_104] : memref<8xf32, #tpu.memory_space<smem>>
    %250 = vector.broadcast %249 : f32 to vector<1x128xf32>
    %251 = arith.addf %248, %250 : vector<1x128xf32>
    %c3_105 = arith.constant 3 : index
    %c0_106 = arith.constant 0 : index
    %252 = memref.load %arg3[%c3_105, %c0_106] : memref<8x4xf32, #tpu.memory_space<smem>>
    %253 = vector.broadcast %252 : f32 to vector<1x128xf32>
    %254 = arith.mulf %125, %253 : vector<1x128xf32>
    %c3_107 = arith.constant 3 : index
    %c1_108 = arith.constant 1 : index
    %255 = memref.load %arg3[%c3_107, %c1_108] : memref<8x4xf32, #tpu.memory_space<smem>>
    %256 = vector.broadcast %255 : f32 to vector<1x128xf32>
    %257 = arith.mulf %149, %256 : vector<1x128xf32>
    %258 = arith.addf %254, %257 : vector<1x128xf32>
    %c3_109 = arith.constant 3 : index
    %c2_110 = arith.constant 2 : index
    %259 = memref.load %arg3[%c3_109, %c2_110] : memref<8x4xf32, #tpu.memory_space<smem>>
    %260 = vector.broadcast %259 : f32 to vector<1x128xf32>
    %261 = arith.mulf %173, %260 : vector<1x128xf32>
    %262 = arith.addf %258, %261 : vector<1x128xf32>
    %c3_111 = arith.constant 3 : index
    %c3_112 = arith.constant 3 : index
    %263 = memref.load %arg3[%c3_111, %c3_112] : memref<8x4xf32, #tpu.memory_space<smem>>
    %264 = vector.broadcast %263 : f32 to vector<1x128xf32>
    %265 = arith.mulf %197, %264 : vector<1x128xf32>
    %266 = arith.addf %262, %265 : vector<1x128xf32>
    %c3_113 = arith.constant 3 : index
    %267 = memref.load %arg4[%c3_113] : memref<8xf32, #tpu.memory_space<smem>>
    %268 = vector.broadcast %267 : f32 to vector<1x128xf32>
    %269 = arith.addf %266, %268 : vector<1x128xf32>
    %c4 = arith.constant 4 : index
    %c0_114 = arith.constant 0 : index
    %270 = memref.load %arg3[%c4, %c0_114] : memref<8x4xf32, #tpu.memory_space<smem>>
    %271 = vector.broadcast %270 : f32 to vector<1x128xf32>
    %272 = arith.mulf %125, %271 : vector<1x128xf32>
    %c4_115 = arith.constant 4 : index
    %c1_116 = arith.constant 1 : index
    %273 = memref.load %arg3[%c4_115, %c1_116] : memref<8x4xf32, #tpu.memory_space<smem>>
    %274 = vector.broadcast %273 : f32 to vector<1x128xf32>
    %275 = arith.mulf %149, %274 : vector<1x128xf32>
    %276 = arith.addf %272, %275 : vector<1x128xf32>
    %c4_117 = arith.constant 4 : index
    %c2_118 = arith.constant 2 : index
    %277 = memref.load %arg3[%c4_117, %c2_118] : memref<8x4xf32, #tpu.memory_space<smem>>
    %278 = vector.broadcast %277 : f32 to vector<1x128xf32>
    %279 = arith.mulf %173, %278 : vector<1x128xf32>
    %280 = arith.addf %276, %279 : vector<1x128xf32>
    %c4_119 = arith.constant 4 : index
    %c3_120 = arith.constant 3 : index
    %281 = memref.load %arg3[%c4_119, %c3_120] : memref<8x4xf32, #tpu.memory_space<smem>>
    %282 = vector.broadcast %281 : f32 to vector<1x128xf32>
    %283 = arith.mulf %197, %282 : vector<1x128xf32>
    %284 = arith.addf %280, %283 : vector<1x128xf32>
    %c4_121 = arith.constant 4 : index
    %285 = memref.load %arg4[%c4_121] : memref<8xf32, #tpu.memory_space<smem>>
    %286 = vector.broadcast %285 : f32 to vector<1x128xf32>
    %287 = arith.addf %284, %286 : vector<1x128xf32>
    %c5 = arith.constant 5 : index
    %c0_122 = arith.constant 0 : index
    %288 = memref.load %arg3[%c5, %c0_122] : memref<8x4xf32, #tpu.memory_space<smem>>
    %289 = vector.broadcast %288 : f32 to vector<1x128xf32>
    %290 = arith.mulf %125, %289 : vector<1x128xf32>
    %c5_123 = arith.constant 5 : index
    %c1_124 = arith.constant 1 : index
    %291 = memref.load %arg3[%c5_123, %c1_124] : memref<8x4xf32, #tpu.memory_space<smem>>
    %292 = vector.broadcast %291 : f32 to vector<1x128xf32>
    %293 = arith.mulf %149, %292 : vector<1x128xf32>
    %294 = arith.addf %290, %293 : vector<1x128xf32>
    %c5_125 = arith.constant 5 : index
    %c2_126 = arith.constant 2 : index
    %295 = memref.load %arg3[%c5_125, %c2_126] : memref<8x4xf32, #tpu.memory_space<smem>>
    %296 = vector.broadcast %295 : f32 to vector<1x128xf32>
    %297 = arith.mulf %173, %296 : vector<1x128xf32>
    %298 = arith.addf %294, %297 : vector<1x128xf32>
    %c5_127 = arith.constant 5 : index
    %c3_128 = arith.constant 3 : index
    %299 = memref.load %arg3[%c5_127, %c3_128] : memref<8x4xf32, #tpu.memory_space<smem>>
    %300 = vector.broadcast %299 : f32 to vector<1x128xf32>
    %301 = arith.mulf %197, %300 : vector<1x128xf32>
    %302 = arith.addf %298, %301 : vector<1x128xf32>
    %c5_129 = arith.constant 5 : index
    %303 = memref.load %arg4[%c5_129] : memref<8xf32, #tpu.memory_space<smem>>
    %304 = vector.broadcast %303 : f32 to vector<1x128xf32>
    %305 = arith.addf %302, %304 : vector<1x128xf32>
    %c6 = arith.constant 6 : index
    %c0_130 = arith.constant 0 : index
    %306 = memref.load %arg3[%c6, %c0_130] : memref<8x4xf32, #tpu.memory_space<smem>>
    %307 = vector.broadcast %306 : f32 to vector<1x128xf32>
    %308 = arith.mulf %125, %307 : vector<1x128xf32>
    %c6_131 = arith.constant 6 : index
    %c1_132 = arith.constant 1 : index
    %309 = memref.load %arg3[%c6_131, %c1_132] : memref<8x4xf32, #tpu.memory_space<smem>>
    %310 = vector.broadcast %309 : f32 to vector<1x128xf32>
    %311 = arith.mulf %149, %310 : vector<1x128xf32>
    %312 = arith.addf %308, %311 : vector<1x128xf32>
    %c6_133 = arith.constant 6 : index
    %c2_134 = arith.constant 2 : index
    %313 = memref.load %arg3[%c6_133, %c2_134] : memref<8x4xf32, #tpu.memory_space<smem>>
    %314 = vector.broadcast %313 : f32 to vector<1x128xf32>
    %315 = arith.mulf %173, %314 : vector<1x128xf32>
    %316 = arith.addf %312, %315 : vector<1x128xf32>
    %c6_135 = arith.constant 6 : index
    %c3_136 = arith.constant 3 : index
    %317 = memref.load %arg3[%c6_135, %c3_136] : memref<8x4xf32, #tpu.memory_space<smem>>
    %318 = vector.broadcast %317 : f32 to vector<1x128xf32>
    %319 = arith.mulf %197, %318 : vector<1x128xf32>
    %320 = arith.addf %316, %319 : vector<1x128xf32>
    %c6_137 = arith.constant 6 : index
    %321 = memref.load %arg4[%c6_137] : memref<8xf32, #tpu.memory_space<smem>>
    %322 = vector.broadcast %321 : f32 to vector<1x128xf32>
    %323 = arith.addf %320, %322 : vector<1x128xf32>
    %c7 = arith.constant 7 : index
    %c0_138 = arith.constant 0 : index
    %324 = memref.load %arg3[%c7, %c0_138] : memref<8x4xf32, #tpu.memory_space<smem>>
    %325 = vector.broadcast %324 : f32 to vector<1x128xf32>
    %326 = arith.mulf %125, %325 : vector<1x128xf32>
    %c7_139 = arith.constant 7 : index
    %c1_140 = arith.constant 1 : index
    %327 = memref.load %arg3[%c7_139, %c1_140] : memref<8x4xf32, #tpu.memory_space<smem>>
    %328 = vector.broadcast %327 : f32 to vector<1x128xf32>
    %329 = arith.mulf %149, %328 : vector<1x128xf32>
    %330 = arith.addf %326, %329 : vector<1x128xf32>
    %c7_141 = arith.constant 7 : index
    %c2_142 = arith.constant 2 : index
    %331 = memref.load %arg3[%c7_141, %c2_142] : memref<8x4xf32, #tpu.memory_space<smem>>
    %332 = vector.broadcast %331 : f32 to vector<1x128xf32>
    %333 = arith.mulf %173, %332 : vector<1x128xf32>
    %334 = arith.addf %330, %333 : vector<1x128xf32>
    %c7_143 = arith.constant 7 : index
    %c3_144 = arith.constant 3 : index
    %335 = memref.load %arg3[%c7_143, %c3_144] : memref<8x4xf32, #tpu.memory_space<smem>>
    %336 = vector.broadcast %335 : f32 to vector<1x128xf32>
    %337 = arith.mulf %197, %336 : vector<1x128xf32>
    %338 = arith.addf %334, %337 : vector<1x128xf32>
    %c7_145 = arith.constant 7 : index
    %339 = memref.load %arg4[%c7_145] : memref<8xf32, #tpu.memory_space<smem>>
    %340 = vector.broadcast %339 : f32 to vector<1x128xf32>
    %341 = arith.addf %338, %340 : vector<1x128xf32>
    %342 = tpu.concatenate %215, %233, %251, %269, %287, %305, %323, %341 in 0 : vector<1x128xf32>, vector<1x128xf32>, vector<1x128xf32>, vector<1x128xf32>, vector<1x128xf32>, vector<1x128xf32>, vector<1x128xf32>, vector<1x128xf32> -> vector<8x128xf32>
    %c0_146 = arith.constant 0 : index
    %c0_147 = arith.constant 0 : index
    %c0_148 = arith.constant 0 : index
    %343 = vector.load %arg6[%c0_146, %c0_147, %c0_148] : memref<2x8x128xf32, #tpu.memory_space<vmem>>, vector<1x8x128xf32>
    %344 = vector.shape_cast %343 : vector<1x8x128xf32> to vector<8x128xf32>
    %345 = vector.shape_cast %342 : vector<8x128xf32> to vector<1x8x128xf32>
    tpu.vector_store %arg6[%c0_146, %c0_147, %c0_148], %345 {strides = array<i32>} : memref<2x8x128xf32, #tpu.memory_space<vmem>>, vector<1x8x128xf32>,
    %c1_149 = arith.constant 1 : index
    %c0_150 = arith.constant 0 : index
    %c0_151 = arith.constant 0 : index
    %346 = vector.load %arg5[%c1_149, %c0_150, %c0_151] : memref<2x4x128xf32, #tpu.memory_space<vmem>>, vector<1x4x128xf32>
    %347 = vector.shape_cast %346 : vector<1x4x128xf32> to vector<4x128xf32>
    %348 = vector.extract_strided_slice %347 {offsets = [0, 0], sizes = [1, 128], strides = [1, 1]} : vector<4x128xf32> to vector<1x128xf32>
    %349 = vector.extract_strided_slice %347 {offsets = [1, 0], sizes = [1, 128], strides = [1, 1]} : vector<4x128xf32> to vector<1x128xf32>
    %350 = vector.extract_strided_slice %347 {offsets = [2, 0], sizes = [1, 128], strides = [1, 1]} : vector<4x128xf32> to vector<1x128xf32>
    %351 = vector.extract_strided_slice %347 {offsets = [3, 0], sizes = [1, 128], strides = [1, 1]} : vector<4x128xf32> to vector<1x128xf32>
    %c0_152 = arith.constant 0 : index
    %c0_153 = arith.constant 0 : index
    %352 = memref.load %arg1[%c0_152, %c0_153] : memref<4x4xf32, #tpu.memory_space<smem>>
    %353 = vector.broadcast %352 : f32 to vector<1x128xf32>
    %354 = arith.mulf %348, %353 : vector<1x128xf32>
    %c0_154 = arith.constant 0 : index
    %c1_155 = arith.constant 1 : index
    %355 = memref.load %arg1[%c0_154, %c1_155] : memref<4x4xf32, #tpu.memory_space<smem>>
    %356 = vector.broadcast %355 : f32 to vector<1x128xf32>
    %357 = arith.mulf %349, %356 : vector<1x128xf32>
    %358 = arith.addf %354, %357 : vector<1x128xf32>
    %c0_156 = arith.constant 0 : index
    %c2_157 = arith.constant 2 : index
    %359 = memref.load %arg1[%c0_156, %c2_157] : memref<4x4xf32, #tpu.memory_space<smem>>
    %360 = vector.broadcast %359 : f32 to vector<1x128xf32>
    %361 = arith.mulf %350, %360 : vector<1x128xf32>
    %362 = arith.addf %358, %361 : vector<1x128xf32>
    %c0_158 = arith.constant 0 : index
    %c3_159 = arith.constant 3 : index
    %363 = memref.load %arg1[%c0_158, %c3_159] : memref<4x4xf32, #tpu.memory_space<smem>>
    %364 = vector.broadcast %363 : f32 to vector<1x128xf32>
    %365 = arith.mulf %351, %364 : vector<1x128xf32>
    %366 = arith.addf %362, %365 : vector<1x128xf32>
    %c0_160 = arith.constant 0 : index
    %367 = memref.load %arg2[%c0_160] : memref<4xf32, #tpu.memory_space<smem>>
    %368 = vector.broadcast %367 : f32 to vector<1x128xf32>
    %369 = arith.addf %366, %368 : vector<1x128xf32>
    %370 = arith.negf %369 : vector<1x128xf32>
    %371 = math.exp %370 : vector<1x128xf32>
    %cst_161 = arith.constant 1.000000e+00 : f32
    %372 = vector.broadcast %cst_161 : f32 to vector<1x128xf32>
    %373 = arith.addf %372, %371 : vector<1x128xf32>
    %374 = arith.divf %372, %373 : vector<1x128xf32>
    %375 = arith.mulf %369, %374 : vector<1x128xf32>
    %c1_162 = arith.constant 1 : index
    %c0_163 = arith.constant 0 : index
    %376 = memref.load %arg1[%c1_162, %c0_163] : memref<4x4xf32, #tpu.memory_space<smem>>
    %377 = vector.broadcast %376 : f32 to vector<1x128xf32>
    %378 = arith.mulf %348, %377 : vector<1x128xf32>
    %c1_164 = arith.constant 1 : index
    %c1_165 = arith.constant 1 : index
    %379 = memref.load %arg1[%c1_164, %c1_165] : memref<4x4xf32, #tpu.memory_space<smem>>
    %380 = vector.broadcast %379 : f32 to vector<1x128xf32>
    %381 = arith.mulf %349, %380 : vector<1x128xf32>
    %382 = arith.addf %378, %381 : vector<1x128xf32>
    %c1_166 = arith.constant 1 : index
    %c2_167 = arith.constant 2 : index
    %383 = memref.load %arg1[%c1_166, %c2_167] : memref<4x4xf32, #tpu.memory_space<smem>>
    %384 = vector.broadcast %383 : f32 to vector<1x128xf32>
    %385 = arith.mulf %350, %384 : vector<1x128xf32>
    %386 = arith.addf %382, %385 : vector<1x128xf32>
    %c1_168 = arith.constant 1 : index
    %c3_169 = arith.constant 3 : index
    %387 = memref.load %arg1[%c1_168, %c3_169] : memref<4x4xf32, #tpu.memory_space<smem>>
    %388 = vector.broadcast %387 : f32 to vector<1x128xf32>
    %389 = arith.mulf %351, %388 : vector<1x128xf32>
    %390 = arith.addf %386, %389 : vector<1x128xf32>
    %c1_170 = arith.constant 1 : index
    %391 = memref.load %arg2[%c1_170] : memref<4xf32, #tpu.memory_space<smem>>
    %392 = vector.broadcast %391 : f32 to vector<1x128xf32>
    %393 = arith.addf %390, %392 : vector<1x128xf32>
    %394 = arith.negf %393 : vector<1x128xf32>
    %395 = math.exp %394 : vector<1x128xf32>
    %cst_171 = arith.constant 1.000000e+00 : f32
    %396 = vector.broadcast %cst_171 : f32 to vector<1x128xf32>
    %397 = arith.addf %396, %395 : vector<1x128xf32>
    %398 = arith.divf %396, %397 : vector<1x128xf32>
    %399 = arith.mulf %393, %398 : vector<1x128xf32>
    %c2_172 = arith.constant 2 : index
    %c0_173 = arith.constant 0 : index
    %400 = memref.load %arg1[%c2_172, %c0_173] : memref<4x4xf32, #tpu.memory_space<smem>>
    %401 = vector.broadcast %400 : f32 to vector<1x128xf32>
    %402 = arith.mulf %348, %401 : vector<1x128xf32>
    %c2_174 = arith.constant 2 : index
    %c1_175 = arith.constant 1 : index
    %403 = memref.load %arg1[%c2_174, %c1_175] : memref<4x4xf32, #tpu.memory_space<smem>>
    %404 = vector.broadcast %403 : f32 to vector<1x128xf32>
    %405 = arith.mulf %349, %404 : vector<1x128xf32>
    %406 = arith.addf %402, %405 : vector<1x128xf32>
    %c2_176 = arith.constant 2 : index
    %c2_177 = arith.constant 2 : index
    %407 = memref.load %arg1[%c2_176, %c2_177] : memref<4x4xf32, #tpu.memory_space<smem>>
    %408 = vector.broadcast %407 : f32 to vector<1x128xf32>
    %409 = arith.mulf %350, %408 : vector<1x128xf32>
    %410 = arith.addf %406, %409 : vector<1x128xf32>
    %c2_178 = arith.constant 2 : index
    %c3_179 = arith.constant 3 : index
    %411 = memref.load %arg1[%c2_178, %c3_179] : memref<4x4xf32, #tpu.memory_space<smem>>
    %412 = vector.broadcast %411 : f32 to vector<1x128xf32>
    %413 = arith.mulf %351, %412 : vector<1x128xf32>
    %414 = arith.addf %410, %413 : vector<1x128xf32>
    %c2_180 = arith.constant 2 : index
    %415 = memref.load %arg2[%c2_180] : memref<4xf32, #tpu.memory_space<smem>>
    %416 = vector.broadcast %415 : f32 to vector<1x128xf32>
    %417 = arith.addf %414, %416 : vector<1x128xf32>
    %418 = arith.negf %417 : vector<1x128xf32>
    %419 = math.exp %418 : vector<1x128xf32>
    %cst_181 = arith.constant 1.000000e+00 : f32
    %420 = vector.broadcast %cst_181 : f32 to vector<1x128xf32>
    %421 = arith.addf %420, %419 : vector<1x128xf32>
    %422 = arith.divf %420, %421 : vector<1x128xf32>
    %423 = arith.mulf %417, %422 : vector<1x128xf32>
    %c3_182 = arith.constant 3 : index
    %c0_183 = arith.constant 0 : index
    %424 = memref.load %arg1[%c3_182, %c0_183] : memref<4x4xf32, #tpu.memory_space<smem>>
    %425 = vector.broadcast %424 : f32 to vector<1x128xf32>
    %426 = arith.mulf %348, %425 : vector<1x128xf32>
    %c3_184 = arith.constant 3 : index
    %c1_185 = arith.constant 1 : index
    %427 = memref.load %arg1[%c3_184, %c1_185] : memref<4x4xf32, #tpu.memory_space<smem>>
    %428 = vector.broadcast %427 : f32 to vector<1x128xf32>
    %429 = arith.mulf %349, %428 : vector<1x128xf32>
    %430 = arith.addf %426, %429 : vector<1x128xf32>
    %c3_186 = arith.constant 3 : index
    %c2_187 = arith.constant 2 : index
    %431 = memref.load %arg1[%c3_186, %c2_187] : memref<4x4xf32, #tpu.memory_space<smem>>
    %432 = vector.broadcast %431 : f32 to vector<1x128xf32>
    %433 = arith.mulf %350, %432 : vector<1x128xf32>
    %434 = arith.addf %430, %433 : vector<1x128xf32>
    %c3_188 = arith.constant 3 : index
    %c3_189 = arith.constant 3 : index
    %435 = memref.load %arg1[%c3_188, %c3_189] : memref<4x4xf32, #tpu.memory_space<smem>>
    %436 = vector.broadcast %435 : f32 to vector<1x128xf32>
    %437 = arith.mulf %351, %436 : vector<1x128xf32>
    %438 = arith.addf %434, %437 : vector<1x128xf32>
    %c3_190 = arith.constant 3 : index
    %439 = memref.load %arg2[%c3_190] : memref<4xf32, #tpu.memory_space<smem>>
    %440 = vector.broadcast %439 : f32 to vector<1x128xf32>
    %441 = arith.addf %438, %440 : vector<1x128xf32>
    %442 = arith.negf %441 : vector<1x128xf32>
    %443 = math.exp %442 : vector<1x128xf32>
    %cst_191 = arith.constant 1.000000e+00 : f32
    %444 = vector.broadcast %cst_191 : f32 to vector<1x128xf32>
    %445 = arith.addf %444, %443 : vector<1x128xf32>
    %446 = arith.divf %444, %445 : vector<1x128xf32>
    %447 = arith.mulf %441, %446 : vector<1x128xf32>
    %c0_192 = arith.constant 0 : index
    %c0_193 = arith.constant 0 : index
    %448 = memref.load %arg1[%c0_192, %c0_193] : memref<4x4xf32, #tpu.memory_space<smem>>
    %449 = vector.broadcast %448 : f32 to vector<1x128xf32>
    %450 = arith.mulf %375, %449 : vector<1x128xf32>
    %c0_194 = arith.constant 0 : index
    %c1_195 = arith.constant 1 : index
    %451 = memref.load %arg1[%c0_194, %c1_195] : memref<4x4xf32, #tpu.memory_space<smem>>
    %452 = vector.broadcast %451 : f32 to vector<1x128xf32>
    %453 = arith.mulf %399, %452 : vector<1x128xf32>
    %454 = arith.addf %450, %453 : vector<1x128xf32>
    %c0_196 = arith.constant 0 : index
    %c2_197 = arith.constant 2 : index
    %455 = memref.load %arg1[%c0_196, %c2_197] : memref<4x4xf32, #tpu.memory_space<smem>>
    %456 = vector.broadcast %455 : f32 to vector<1x128xf32>
    %457 = arith.mulf %423, %456 : vector<1x128xf32>
    %458 = arith.addf %454, %457 : vector<1x128xf32>
    %c0_198 = arith.constant 0 : index
    %c3_199 = arith.constant 3 : index
    %459 = memref.load %arg1[%c0_198, %c3_199] : memref<4x4xf32, #tpu.memory_space<smem>>
    %460 = vector.broadcast %459 : f32 to vector<1x128xf32>
    %461 = arith.mulf %447, %460 : vector<1x128xf32>
    %462 = arith.addf %458, %461 : vector<1x128xf32>
    %c0_200 = arith.constant 0 : index
    %463 = memref.load %arg2[%c0_200] : memref<4xf32, #tpu.memory_space<smem>>
    %464 = vector.broadcast %463 : f32 to vector<1x128xf32>
    %465 = arith.addf %462, %464 : vector<1x128xf32>
    %466 = arith.negf %465 : vector<1x128xf32>
    %467 = math.exp %466 : vector<1x128xf32>
    %cst_201 = arith.constant 1.000000e+00 : f32
    %468 = vector.broadcast %cst_201 : f32 to vector<1x128xf32>
    %469 = arith.addf %468, %467 : vector<1x128xf32>
    %470 = arith.divf %468, %469 : vector<1x128xf32>
    %471 = arith.mulf %465, %470 : vector<1x128xf32>
    %c1_202 = arith.constant 1 : index
    %c0_203 = arith.constant 0 : index
    %472 = memref.load %arg1[%c1_202, %c0_203] : memref<4x4xf32, #tpu.memory_space<smem>>
    %473 = vector.broadcast %472 : f32 to vector<1x128xf32>
    %474 = arith.mulf %375, %473 : vector<1x128xf32>
    %c1_204 = arith.constant 1 : index
    %c1_205 = arith.constant 1 : index
    %475 = memref.load %arg1[%c1_204, %c1_205] : memref<4x4xf32, #tpu.memory_space<smem>>
    %476 = vector.broadcast %475 : f32 to vector<1x128xf32>
    %477 = arith.mulf %399, %476 : vector<1x128xf32>
    %478 = arith.addf %474, %477 : vector<1x128xf32>
    %c1_206 = arith.constant 1 : index
    %c2_207 = arith.constant 2 : index
    %479 = memref.load %arg1[%c1_206, %c2_207] : memref<4x4xf32, #tpu.memory_space<smem>>
    %480 = vector.broadcast %479 : f32 to vector<1x128xf32>
    %481 = arith.mulf %423, %480 : vector<1x128xf32>
    %482 = arith.addf %478, %481 : vector<1x128xf32>
    %c1_208 = arith.constant 1 : index
    %c3_209 = arith.constant 3 : index
    %483 = memref.load %arg1[%c1_208, %c3_209] : memref<4x4xf32, #tpu.memory_space<smem>>
    %484 = vector.broadcast %483 : f32 to vector<1x128xf32>
    %485 = arith.mulf %447, %484 : vector<1x128xf32>
    %486 = arith.addf %482, %485 : vector<1x128xf32>
    %c1_210 = arith.constant 1 : index
    %487 = memref.load %arg2[%c1_210] : memref<4xf32, #tpu.memory_space<smem>>
    %488 = vector.broadcast %487 : f32 to vector<1x128xf32>
    %489 = arith.addf %486, %488 : vector<1x128xf32>
    %490 = arith.negf %489 : vector<1x128xf32>
    %491 = math.exp %490 : vector<1x128xf32>
    %cst_211 = arith.constant 1.000000e+00 : f32
    %492 = vector.broadcast %cst_211 : f32 to vector<1x128xf32>
    %493 = arith.addf %492, %491 : vector<1x128xf32>
    %494 = arith.divf %492, %493 : vector<1x128xf32>
    %495 = arith.mulf %489, %494 : vector<1x128xf32>
    %c2_212 = arith.constant 2 : index
    %c0_213 = arith.constant 0 : index
    %496 = memref.load %arg1[%c2_212, %c0_213] : memref<4x4xf32, #tpu.memory_space<smem>>
    %497 = vector.broadcast %496 : f32 to vector<1x128xf32>
    %498 = arith.mulf %375, %497 : vector<1x128xf32>
    %c2_214 = arith.constant 2 : index
    %c1_215 = arith.constant 1 : index
    %499 = memref.load %arg1[%c2_214, %c1_215] : memref<4x4xf32, #tpu.memory_space<smem>>
    %500 = vector.broadcast %499 : f32 to vector<1x128xf32>
    %501 = arith.mulf %399, %500 : vector<1x128xf32>
    %502 = arith.addf %498, %501 : vector<1x128xf32>
    %c2_216 = arith.constant 2 : index
    %c2_217 = arith.constant 2 : index
    %503 = memref.load %arg1[%c2_216, %c2_217] : memref<4x4xf32, #tpu.memory_space<smem>>
    %504 = vector.broadcast %503 : f32 to vector<1x128xf32>
    %505 = arith.mulf %423, %504 : vector<1x128xf32>
    %506 = arith.addf %502, %505 : vector<1x128xf32>
    %c2_218 = arith.constant 2 : index
    %c3_219 = arith.constant 3 : index
    %507 = memref.load %arg1[%c2_218, %c3_219] : memref<4x4xf32, #tpu.memory_space<smem>>
    %508 = vector.broadcast %507 : f32 to vector<1x128xf32>
    %509 = arith.mulf %447, %508 : vector<1x128xf32>
    %510 = arith.addf %506, %509 : vector<1x128xf32>
    %c2_220 = arith.constant 2 : index
    %511 = memref.load %arg2[%c2_220] : memref<4xf32, #tpu.memory_space<smem>>
    %512 = vector.broadcast %511 : f32 to vector<1x128xf32>
    %513 = arith.addf %510, %512 : vector<1x128xf32>
    %514 = arith.negf %513 : vector<1x128xf32>
    %515 = math.exp %514 : vector<1x128xf32>
    %cst_221 = arith.constant 1.000000e+00 : f32
    %516 = vector.broadcast %cst_221 : f32 to vector<1x128xf32>
    %517 = arith.addf %516, %515 : vector<1x128xf32>
    %518 = arith.divf %516, %517 : vector<1x128xf32>
    %519 = arith.mulf %513, %518 : vector<1x128xf32>
    %c3_222 = arith.constant 3 : index
    %c0_223 = arith.constant 0 : index
    %520 = memref.load %arg1[%c3_222, %c0_223] : memref<4x4xf32, #tpu.memory_space<smem>>
    %521 = vector.broadcast %520 : f32 to vector<1x128xf32>
    %522 = arith.mulf %375, %521 : vector<1x128xf32>
    %c3_224 = arith.constant 3 : index
    %c1_225 = arith.constant 1 : index
    %523 = memref.load %arg1[%c3_224, %c1_225] : memref<4x4xf32, #tpu.memory_space<smem>>
    %524 = vector.broadcast %523 : f32 to vector<1x128xf32>
    %525 = arith.mulf %399, %524 : vector<1x128xf32>
    %526 = arith.addf %522, %525 : vector<1x128xf32>
    %c3_226 = arith.constant 3 : index
    %c2_227 = arith.constant 2 : index
    %527 = memref.load %arg1[%c3_226, %c2_227] : memref<4x4xf32, #tpu.memory_space<smem>>
    %528 = vector.broadcast %527 : f32 to vector<1x128xf32>
    %529 = arith.mulf %423, %528 : vector<1x128xf32>
    %530 = arith.addf %526, %529 : vector<1x128xf32>
    %c3_228 = arith.constant 3 : index
    %c3_229 = arith.constant 3 : index
    %531 = memref.load %arg1[%c3_228, %c3_229] : memref<4x4xf32, #tpu.memory_space<smem>>
    %532 = vector.broadcast %531 : f32 to vector<1x128xf32>
    %533 = arith.mulf %447, %532 : vector<1x128xf32>
    %534 = arith.addf %530, %533 : vector<1x128xf32>
    %c3_230 = arith.constant 3 : index
    %535 = memref.load %arg2[%c3_230] : memref<4xf32, #tpu.memory_space<smem>>
    %536 = vector.broadcast %535 : f32 to vector<1x128xf32>
    %537 = arith.addf %534, %536 : vector<1x128xf32>
    %538 = arith.negf %537 : vector<1x128xf32>
    %539 = math.exp %538 : vector<1x128xf32>
    %cst_231 = arith.constant 1.000000e+00 : f32
    %540 = vector.broadcast %cst_231 : f32 to vector<1x128xf32>
    %541 = arith.addf %540, %539 : vector<1x128xf32>
    %542 = arith.divf %540, %541 : vector<1x128xf32>
    %543 = arith.mulf %537, %542 : vector<1x128xf32>
    %c0_232 = arith.constant 0 : index
    %c0_233 = arith.constant 0 : index
    %544 = memref.load %arg3[%c0_232, %c0_233] : memref<8x4xf32, #tpu.memory_space<smem>>
    %545 = vector.broadcast %544 : f32 to vector<1x128xf32>
    %546 = arith.mulf %471, %545 : vector<1x128xf32>
    %c0_234 = arith.constant 0 : index
    %c1_235 = arith.constant 1 : index
    %547 = memref.load %arg3[%c0_234, %c1_235] : memref<8x4xf32, #tpu.memory_space<smem>>
    %548 = vector.broadcast %547 : f32 to vector<1x128xf32>
    %549 = arith.mulf %495, %548 : vector<1x128xf32>
    %550 = arith.addf %546, %549 : vector<1x128xf32>
    %c0_236 = arith.constant 0 : index
    %c2_237 = arith.constant 2 : index
    %551 = memref.load %arg3[%c0_236, %c2_237] : memref<8x4xf32, #tpu.memory_space<smem>>
    %552 = vector.broadcast %551 : f32 to vector<1x128xf32>
    %553 = arith.mulf %519, %552 : vector<1x128xf32>
    %554 = arith.addf %550, %553 : vector<1x128xf32>
    %c0_238 = arith.constant 0 : index
    %c3_239 = arith.constant 3 : index
    %555 = memref.load %arg3[%c0_238, %c3_239] : memref<8x4xf32, #tpu.memory_space<smem>>
    %556 = vector.broadcast %555 : f32 to vector<1x128xf32>
    %557 = arith.mulf %543, %556 : vector<1x128xf32>
    %558 = arith.addf %554, %557 : vector<1x128xf32>
    %c0_240 = arith.constant 0 : index
    %559 = memref.load %arg4[%c0_240] : memref<8xf32, #tpu.memory_space<smem>>
    %560 = vector.broadcast %559 : f32 to vector<1x128xf32>
    %561 = arith.addf %558, %560 : vector<1x128xf32>
    %c1_241 = arith.constant 1 : index
    %c0_242 = arith.constant 0 : index
    %562 = memref.load %arg3[%c1_241, %c0_242] : memref<8x4xf32, #tpu.memory_space<smem>>
    %563 = vector.broadcast %562 : f32 to vector<1x128xf32>
    %564 = arith.mulf %471, %563 : vector<1x128xf32>
    %c1_243 = arith.constant 1 : index
    %c1_244 = arith.constant 1 : index
    %565 = memref.load %arg3[%c1_243, %c1_244] : memref<8x4xf32, #tpu.memory_space<smem>>
    %566 = vector.broadcast %565 : f32 to vector<1x128xf32>
    %567 = arith.mulf %495, %566 : vector<1x128xf32>
    %568 = arith.addf %564, %567 : vector<1x128xf32>
    %c1_245 = arith.constant 1 : index
    %c2_246 = arith.constant 2 : index
    %569 = memref.load %arg3[%c1_245, %c2_246] : memref<8x4xf32, #tpu.memory_space<smem>>
    %570 = vector.broadcast %569 : f32 to vector<1x128xf32>
    %571 = arith.mulf %519, %570 : vector<1x128xf32>
    %572 = arith.addf %568, %571 : vector<1x128xf32>
    %c1_247 = arith.constant 1 : index
    %c3_248 = arith.constant 3 : index
    %573 = memref.load %arg3[%c1_247, %c3_248] : memref<8x4xf32, #tpu.memory_space<smem>>
    %574 = vector.broadcast %573 : f32 to vector<1x128xf32>
    %575 = arith.mulf %543, %574 : vector<1x128xf32>
    %576 = arith.addf %572, %575 : vector<1x128xf32>
    %c1_249 = arith.constant 1 : index
    %577 = memref.load %arg4[%c1_249] : memref<8xf32, #tpu.memory_space<smem>>
    %578 = vector.broadcast %577 : f32 to vector<1x128xf32>
    %579 = arith.addf %576, %578 : vector<1x128xf32>
    %c2_250 = arith.constant 2 : index
    %c0_251 = arith.constant 0 : index
    %580 = memref.load %arg3[%c2_250, %c0_251] : memref<8x4xf32, #tpu.memory_space<smem>>
    %581 = vector.broadcast %580 : f32 to vector<1x128xf32>
    %582 = arith.mulf %471, %581 : vector<1x128xf32>
    %c2_252 = arith.constant 2 : index
    %c1_253 = arith.constant 1 : index
    %583 = memref.load %arg3[%c2_252, %c1_253] : memref<8x4xf32, #tpu.memory_space<smem>>
    %584 = vector.broadcast %583 : f32 to vector<1x128xf32>
    %585 = arith.mulf %495, %584 : vector<1x128xf32>
    %586 = arith.addf %582, %585 : vector<1x128xf32>
    %c2_254 = arith.constant 2 : index
    %c2_255 = arith.constant 2 : index
    %587 = memref.load %arg3[%c2_254, %c2_255] : memref<8x4xf32, #tpu.memory_space<smem>>
    %588 = vector.broadcast %587 : f32 to vector<1x128xf32>
    %589 = arith.mulf %519, %588 : vector<1x128xf32>
    %590 = arith.addf %586, %589 : vector<1x128xf32>
    %c2_256 = arith.constant 2 : index
    %c3_257 = arith.constant 3 : index
    %591 = memref.load %arg3[%c2_256, %c3_257] : memref<8x4xf32, #tpu.memory_space<smem>>
    %592 = vector.broadcast %591 : f32 to vector<1x128xf32>
    %593 = arith.mulf %543, %592 : vector<1x128xf32>
    %594 = arith.addf %590, %593 : vector<1x128xf32>
    %c2_258 = arith.constant 2 : index
    %595 = memref.load %arg4[%c2_258] : memref<8xf32, #tpu.memory_space<smem>>
    %596 = vector.broadcast %595 : f32 to vector<1x128xf32>
    %597 = arith.addf %594, %596 : vector<1x128xf32>
    %c3_259 = arith.constant 3 : index
    %c0_260 = arith.constant 0 : index
    %598 = memref.load %arg3[%c3_259, %c0_260] : memref<8x4xf32, #tpu.memory_space<smem>>
    %599 = vector.broadcast %598 : f32 to vector<1x128xf32>
    %600 = arith.mulf %471, %599 : vector<1x128xf32>
    %c3_261 = arith.constant 3 : index
    %c1_262 = arith.constant 1 : index
    %601 = memref.load %arg3[%c3_261, %c1_262] : memref<8x4xf32, #tpu.memory_space<smem>>
    %602 = vector.broadcast %601 : f32 to vector<1x128xf32>
    %603 = arith.mulf %495, %602 : vector<1x128xf32>
    %604 = arith.addf %600, %603 : vector<1x128xf32>
    %c3_263 = arith.constant 3 : index
    %c2_264 = arith.constant 2 : index
    %605 = memref.load %arg3[%c3_263, %c2_264] : memref<8x4xf32, #tpu.memory_space<smem>>
    %606 = vector.broadcast %605 : f32 to vector<1x128xf32>
    %607 = arith.mulf %519, %606 : vector<1x128xf32>
    %608 = arith.addf %604, %607 : vector<1x128xf32>
    %c3_265 = arith.constant 3 : index
    %c3_266 = arith.constant 3 : index
    %609 = memref.load %arg3[%c3_265, %c3_266] : memref<8x4xf32, #tpu.memory_space<smem>>
    %610 = vector.broadcast %609 : f32 to vector<1x128xf32>
    %611 = arith.mulf %543, %610 : vector<1x128xf32>
    %612 = arith.addf %608, %611 : vector<1x128xf32>
    %c3_267 = arith.constant 3 : index
    %613 = memref.load %arg4[%c3_267] : memref<8xf32, #tpu.memory_space<smem>>
    %614 = vector.broadcast %613 : f32 to vector<1x128xf32>
    %615 = arith.addf %612, %614 : vector<1x128xf32>
    %c4_268 = arith.constant 4 : index
    %c0_269 = arith.constant 0 : index
    %616 = memref.load %arg3[%c4_268, %c0_269] : memref<8x4xf32, #tpu.memory_space<smem>>
    %617 = vector.broadcast %616 : f32 to vector<1x128xf32>
    %618 = arith.mulf %471, %617 : vector<1x128xf32>
    %c4_270 = arith.constant 4 : index
    %c1_271 = arith.constant 1 : index
    %619 = memref.load %arg3[%c4_270, %c1_271] : memref<8x4xf32, #tpu.memory_space<smem>>
    %620 = vector.broadcast %619 : f32 to vector<1x128xf32>
    %621 = arith.mulf %495, %620 : vector<1x128xf32>
    %622 = arith.addf %618, %621 : vector<1x128xf32>
    %c4_272 = arith.constant 4 : index
    %c2_273 = arith.constant 2 : index
    %623 = memref.load %arg3[%c4_272, %c2_273] : memref<8x4xf32, #tpu.memory_space<smem>>
    %624 = vector.broadcast %623 : f32 to vector<1x128xf32>
    %625 = arith.mulf %519, %624 : vector<1x128xf32>
    %626 = arith.addf %622, %625 : vector<1x128xf32>
    %c4_274 = arith.constant 4 : index
    %c3_275 = arith.constant 3 : index
    %627 = memref.load %arg3[%c4_274, %c3_275] : memref<8x4xf32, #tpu.memory_space<smem>>
    %628 = vector.broadcast %627 : f32 to vector<1x128xf32>
    %629 = arith.mulf %543, %628 : vector<1x128xf32>
    %630 = arith.addf %626, %629 : vector<1x128xf32>
    %c4_276 = arith.constant 4 : index
    %631 = memref.load %arg4[%c4_276] : memref<8xf32, #tpu.memory_space<smem>>
    %632 = vector.broadcast %631 : f32 to vector<1x128xf32>
    %633 = arith.addf %630, %632 : vector<1x128xf32>
    %c5_277 = arith.constant 5 : index
    %c0_278 = arith.constant 0 : index
    %634 = memref.load %arg3[%c5_277, %c0_278] : memref<8x4xf32, #tpu.memory_space<smem>>
    %635 = vector.broadcast %634 : f32 to vector<1x128xf32>
    %636 = arith.mulf %471, %635 : vector<1x128xf32>
    %c5_279 = arith.constant 5 : index
    %c1_280 = arith.constant 1 : index
    %637 = memref.load %arg3[%c5_279, %c1_280] : memref<8x4xf32, #tpu.memory_space<smem>>
    %638 = vector.broadcast %637 : f32 to vector<1x128xf32>
    %639 = arith.mulf %495, %638 : vector<1x128xf32>
    %640 = arith.addf %636, %639 : vector<1x128xf32>
    %c5_281 = arith.constant 5 : index
    %c2_282 = arith.constant 2 : index
    %641 = memref.load %arg3[%c5_281, %c2_282] : memref<8x4xf32, #tpu.memory_space<smem>>
    %642 = vector.broadcast %641 : f32 to vector<1x128xf32>
    %643 = arith.mulf %519, %642 : vector<1x128xf32>
    %644 = arith.addf %640, %643 : vector<1x128xf32>
    %c5_283 = arith.constant 5 : index
    %c3_284 = arith.constant 3 : index
    %645 = memref.load %arg3[%c5_283, %c3_284] : memref<8x4xf32, #tpu.memory_space<smem>>
    %646 = vector.broadcast %645 : f32 to vector<1x128xf32>
    %647 = arith.mulf %543, %646 : vector<1x128xf32>
    %648 = arith.addf %644, %647 : vector<1x128xf32>
    %c5_285 = arith.constant 5 : index
    %649 = memref.load %arg4[%c5_285] : memref<8xf32, #tpu.memory_space<smem>>
    %650 = vector.broadcast %649 : f32 to vector<1x128xf32>
    %651 = arith.addf %648, %650 : vector<1x128xf32>
    %c6_286 = arith.constant 6 : index
    %c0_287 = arith.constant 0 : index
    %652 = memref.load %arg3[%c6_286, %c0_287] : memref<8x4xf32, #tpu.memory_space<smem>>
    %653 = vector.broadcast %652 : f32 to vector<1x128xf32>
    %654 = arith.mulf %471, %653 : vector<1x128xf32>
    %c6_288 = arith.constant 6 : index
    %c1_289 = arith.constant 1 : index
    %655 = memref.load %arg3[%c6_288, %c1_289] : memref<8x4xf32, #tpu.memory_space<smem>>
    %656 = vector.broadcast %655 : f32 to vector<1x128xf32>
    %657 = arith.mulf %495, %656 : vector<1x128xf32>
    %658 = arith.addf %654, %657 : vector<1x128xf32>
    %c6_290 = arith.constant 6 : index
    %c2_291 = arith.constant 2 : index
    %659 = memref.load %arg3[%c6_290, %c2_291] : memref<8x4xf32, #tpu.memory_space<smem>>
    %660 = vector.broadcast %659 : f32 to vector<1x128xf32>
    %661 = arith.mulf %519, %660 : vector<1x128xf32>
    %662 = arith.addf %658, %661 : vector<1x128xf32>
    %c6_292 = arith.constant 6 : index
    %c3_293 = arith.constant 3 : index
    %663 = memref.load %arg3[%c6_292, %c3_293] : memref<8x4xf32, #tpu.memory_space<smem>>
    %664 = vector.broadcast %663 : f32 to vector<1x128xf32>
    %665 = arith.mulf %543, %664 : vector<1x128xf32>
    %666 = arith.addf %662, %665 : vector<1x128xf32>
    %c6_294 = arith.constant 6 : index
    %667 = memref.load %arg4[%c6_294] : memref<8xf32, #tpu.memory_space<smem>>
    %668 = vector.broadcast %667 : f32 to vector<1x128xf32>
    %669 = arith.addf %666, %668 : vector<1x128xf32>
    %c7_295 = arith.constant 7 : index
    %c0_296 = arith.constant 0 : index
    %670 = memref.load %arg3[%c7_295, %c0_296] : memref<8x4xf32, #tpu.memory_space<smem>>
    %671 = vector.broadcast %670 : f32 to vector<1x128xf32>
    %672 = arith.mulf %471, %671 : vector<1x128xf32>
    %c7_297 = arith.constant 7 : index
    %c1_298 = arith.constant 1 : index
    %673 = memref.load %arg3[%c7_297, %c1_298] : memref<8x4xf32, #tpu.memory_space<smem>>
    %674 = vector.broadcast %673 : f32 to vector<1x128xf32>
    %675 = arith.mulf %495, %674 : vector<1x128xf32>
    %676 = arith.addf %672, %675 : vector<1x128xf32>
    %c7_299 = arith.constant 7 : index
    %c2_300 = arith.constant 2 : index
    %677 = memref.load %arg3[%c7_299, %c2_300] : memref<8x4xf32, #tpu.memory_space<smem>>
    %678 = vector.broadcast %677 : f32 to vector<1x128xf32>
    %679 = arith.mulf %519, %678 : vector<1x128xf32>
    %680 = arith.addf %676, %679 : vector<1x128xf32>
    %c7_301 = arith.constant 7 : index
    %c3_302 = arith.constant 3 : index
    %681 = memref.load %arg3[%c7_301, %c3_302] : memref<8x4xf32, #tpu.memory_space<smem>>
    %682 = vector.broadcast %681 : f32 to vector<1x128xf32>
    %683 = arith.mulf %543, %682 : vector<1x128xf32>
    %684 = arith.addf %680, %683 : vector<1x128xf32>
    %c7_303 = arith.constant 7 : index
    %685 = memref.load %arg4[%c7_303] : memref<8xf32, #tpu.memory_space<smem>>
    %686 = vector.broadcast %685 : f32 to vector<1x128xf32>
    %687 = arith.addf %684, %686 : vector<1x128xf32>
    %688 = tpu.concatenate %561, %579, %597, %615, %633, %651, %669, %687 in 0 : vector<1x128xf32>, vector<1x128xf32>, vector<1x128xf32>, vector<1x128xf32>, vector<1x128xf32>, vector<1x128xf32>, vector<1x128xf32>, vector<1x128xf32> -> vector<8x128xf32>
    %c1_304 = arith.constant 1 : index
    %c0_305 = arith.constant 0 : index
    %c0_306 = arith.constant 0 : index
    %689 = vector.load %arg6[%c1_304, %c0_305, %c0_306] : memref<2x8x128xf32, #tpu.memory_space<vmem>>, vector<1x8x128xf32>
    %690 = vector.shape_cast %689 : vector<1x8x128xf32> to vector<8x128xf32>
    %691 = vector.shape_cast %688 : vector<8x128xf32> to vector<1x8x128xf32>
    tpu.vector_store %arg6[%c1_304, %c0_305, %c0_306], %691 {strides = array<i32>} : memref<2x8x128xf32, #tpu.memory_space<vmem>>, vector<1x8x128xf32>,
    return
  }
  func.func @transform_0(%arg0: i32) -> (i32, i32) {
    %c0_i32 = arith.constant 0 : i32
    %c0_i32_0 = arith.constant 0 : i32
    %c0_i32_1 = arith.constant 0 : i32
    return %c0_i32, %c0_i32_0 : i32, i32
  }
  func.func @transform_1(%arg0: i32) -> i32 {
    %c0_i32 = arith.constant 0 : i32
    %c0_i32_0 = arith.constant 0 : i32
    return %c0_i32 : i32
  }
  func.func @transform_2(%arg0: i32) -> (i32, i32) {
    %c0_i32 = arith.constant 0 : i32
    %c0_i32_0 = arith.constant 0 : i32
    %c0_i32_1 = arith.constant 0 : i32
    return %c0_i32, %c0_i32_0 : i32, i32
  }
  func.func @transform_3(%arg0: i32) -> i32 {
    %c0_i32 = arith.constant 0 : i32
    %c0_i32_0 = arith.constant 0 : i32
    return %c0_i32 : i32
  }
  func.func @transform_4(%arg0: i32) -> (i32, i32, i32) {
    %c0_i32 = arith.constant 0 : i32
    %c0_i32_0 = arith.constant 0 : i32
    %c0_i32_1 = arith.constant 0 : i32
    return %c0_i32, %c0_i32_0, %arg0 : i32, i32, i32
  }
  func.func @transform_5(%arg0: i32) -> (i32, i32, i32) {
    %c0_i32 = arith.constant 0 : i32
    %c0_i32_0 = arith.constant 0 : i32
    %c0_i32_1 = arith.constant 0 : i32
    return %c0_i32, %c0_i32_0, %arg0 : i32, i32, i32
  }
}

</mosaic_0001>

<llo_original>
// kernel: detect_forward.1
$region0: #{detect_forward.1}
  #allocation0 [shape = 'u32[]', space=smem, size = 0x4, offset = 0x4, fixed_abs, tag = 'smem constant byte address 0x4 - core index']
  #allocation1 [shape = 'u32[144,128]{1,0:T(1,128)}', space=vmem, size = 0x12000, scoped, tag = 'internal scratch']
  %s0 = inlined_call_operand.vmem [shape: f32[4,4], index: 0, kind: input, shape index: {}]
  %s1 = inlined_call_operand.vmem [shape: f32[4], index: 1, kind: input, shape index: {}]
  %s2 = inlined_call_operand.vmem [shape: f32[8,4], index: 2, kind: input, shape index: {}]
  %s3 = inlined_call_operand.vmem [shape: f32[8], index: 3, kind: input, shape index: {}]
  %s4 = inlined_call_operand.vmem [shape: f32[2,4,256], index: 4, kind: input, shape index: {}]
  %s5 = inlined_call_operand.vmem [shape: f32[2,8,256], index: 5, kind: output, shape index: {}]
  %s6 = sld [smem:[#allocation0]]
  $region144: #{detect_forward.1} parent=0
    _
  %s8 = ssub.s32 1, %s6
  %s9 = scalar_select 0, %s8, %s6
  $region1: #{detect_forward.1} parent=0
    #allocation2 [shape = 'u8[2048]{0}', space=smem, size = 0x800, scoped, tag = 'input window, operand 0, single buffered']
    #allocation3 [shape = 's32[2]{0}', space=sflag, size = 0x8, scoped, tag = 'scoped memory for detect_forward.1']
    #allocation4 [shape = 'u8[512]{0}', space=smem, size = 0x200, scoped, tag = 'input window, operand 1, single buffered']
    #allocation5 [shape = 's32[1]{0}', space=sflag, size = 0x4, scoped, tag = 'scoped memory for detect_forward.1']
    #allocation6 [shape = 'u8[4096]{0}', space=smem, size = 0x1000, scoped, tag = 'input window, operand 2, single buffered']
    #allocation7 [shape = 'u8[512]{0}', space=smem, size = 0x200, scoped, tag = 'input window, operand 3, single buffered']
    #allocation8 [shape = 's32[1]{0}', space=sflag, size = 0x4, scoped, tag = 'scoped memory for detect_forward.1']
    #allocation9 [shape = 'u8[8192]{0}', space=vmem, size = 0x2000, scoped, tag = 'input window, operand 4']
    #allocation10 [shape = 'u8[16384]{0}', space=vmem, size = 0x4000, scoped, tag = 'output window, operand 0']
    %10 = vsyncpa [#allocation3], 0
    %11 = vsyncpa [#allocation5], 0
    %12 = vsyncpa [#allocation8], 0
    loop: start=0, step=1, limit=4
    $region2: #{detect_forward.1} parent=1 // loop_pre_header
      _
    $region3: #{detect_forward.1} parent=1 // loop_header
      %s14 = sphi 0, %s18
      %p15 = scmp.ge.s32.totalorder %s14, 4
      %s22 = sphi 0, %s22
      %s24 = sphi 0, %s22
      %s25 = sphi 0, %s24
      %s39 = sphi 0, %s25
      %s43 = sphi 0, %s43
      %s45 = sphi 0, %s43
      %s46 = sphi 0, %s45
      %s60 = sphi 0, %s46
      %s64 = sphi 0, %s64
      %s66 = sphi 0, %s64
      %s67 = sphi 0, %s66
      %s81 = sphi 0, %s67
      %s85 = sphi 0, %s85
      %s87 = sphi 0, %s85
      %s88 = sphi 0, %s87
      %s102 = sphi 0, %s88
      %s108 = sphi 0, %s110
      %s111 = sphi 0, %s108
      %s112 = sphi 0, %s111
      %s128 = sphi 0, %s112
      %s134 = sphi 0, %s136
      %s137 = sphi 0, %s134
      %s138 = sphi 0, %s137
      %s154 = sphi 0, %s138
    $region4: #{detect_forward.1} parent=1 // loop_header_branch
      %17 = sbr.rel (%p15) target = $region8
    $region5: #{detect_forward.1} parent=1 // loop_body
      %s19 = ssub.s32 %s14, 1
      %s20 = ssub.s32 %s14, 2
      %s21 = sadd.s32 %s14, 1
      %s23 = sadd.s32 %s22, 1
      %p26 = scmp.eq.s32.totalorder %s14, 1
      %p27 = scmp.ne.s32.totalorder %s22, %s24
      %p28 = scmp.eq.s32.totalorder %s14, 0
      %p29 = por %p27, %p28
      %p30 = scmp.ne.s32.totalorder %s22, %s24
      %p31 = scmp.eq.s32.totalorder %s19, 1
      %p32 = por %p30, %p31
      %p33 = scmp.ne.s32.totalorder %s24, %s25
      %p34 = scmp.eq.s32.totalorder %s19, 0
      %p35 = por %p33, %p34
      %p36 = scmp.ne.s32.totalorder %s24, %s25
      %p37 = scmp.eq.s32.totalorder %s20, 1
      %p38 = por %p36, %p37
      %p40 = scmp.ne.s32.totalorder %s25, %s39
      %p41 = scmp.eq.s32.totalorder %s20, 0
      %p42 = por %p40, %p41
      %s44 = sadd.s32 %s43, 1
      %p47 = scmp.eq.s32.totalorder %s14, 1
      %p48 = scmp.ne.s32.totalorder %s43, %s45
      %p49 = scmp.eq.s32.totalorder %s14, 0
      %p50 = por %p48, %p49
      %p51 = scmp.ne.s32.totalorder %s43, %s45
      %p52 = scmp.eq.s32.totalorder %s19, 1
      %p53 = por %p51, %p52
      %p54 = scmp.ne.s32.totalorder %s45, %s46
      %p55 = scmp.eq.s32.totalorder %s19, 0
      %p56 = por %p54, %p55
      %p57 = scmp.ne.s32.totalorder %s45, %s46
      %p58 = scmp.eq.s32.totalorder %s20, 1
      %p59 = por %p57, %p58
      %p61 = scmp.ne.s32.totalorder %s46, %s60
      %p62 = scmp.eq.s32.totalorder %s20, 0
      %p63 = por %p61, %p62
      %s65 = sadd.s32 %s64, 1
      %p68 = scmp.eq.s32.totalorder %s14, 1
      %p69 = scmp.ne.s32.totalorder %s64, %s66
      %p70 = scmp.eq.s32.totalorder %s14, 0
      %p71 = por %p69, %p70
      %p72 = scmp.ne.s32.totalorder %s64, %s66
      %p73 = scmp.eq.s32.totalorder %s19, 1
      %p74 = por %p72, %p73
      %p75 = scmp.ne.s32.totalorder %s66, %s67
      %p76 = scmp.eq.s32.totalorder %s19, 0
      %p77 = por %p75, %p76
      %p78 = scmp.ne.s32.totalorder %s66, %s67
      %p79 = scmp.eq.s32.totalorder %s20, 1
      %p80 = por %p78, %p79
      %p82 = scmp.ne.s32.totalorder %s67, %s81
      %p83 = scmp.eq.s32.totalorder %s20, 0
      %p84 = por %p82, %p83
      %s86 = sadd.s32 %s85, 1
      %p89 = scmp.eq.s32.totalorder %s14, 1
      %p90 = scmp.ne.s32.totalorder %s85, %s87
      %p91 = scmp.eq.s32.totalorder %s14, 0
      %p92 = por %p90, %p91
      %p93 = scmp.ne.s32.totalorder %s85, %s87
      %p94 = scmp.eq.s32.totalorder %s19, 1
      %p95 = por %p93, %p94
      %p96 = scmp.ne.s32.totalorder %s87, %s88
      %p97 = scmp.eq.s32.totalorder %s19, 0
      %p98 = por %p96, %p97
      %p99 = scmp.ne.s32.totalorder %s87, %s88
      %p100 = scmp.eq.s32.totalorder %s20, 1
      %p101 = por %p99, %p100
      %p103 = scmp.ne.s32.totalorder %s88, %s102
      %p104 = scmp.eq.s32.totalorder %s20, 0
      %p105 = por %p103, %p104
      %s106 = ssub.s32 %s14, %s21
      %p107 = scmp.eq.s32.totalorder %s106, 0
      %s109 = sadd.s32 %s108, 1
      %s110 = scalar_select %p107, %s108, %s109
      %p113 = pneg %p107
      %p114 = scmp.eq.s32.totalorder %s14, 1
      %p115 = por %p113, %p114
      %p116 = scmp.ne.s32.totalorder %s108, %s111
      %p117 = scmp.eq.s32.totalorder %s14, 0
      %p118 = por %p116, %p117
      %p119 = scmp.ne.s32.totalorder %s108, %s111
      %p120 = scmp.eq.s32.totalorder %s19, 1
      %p121 = por %p119, %p120
      %p122 = scmp.ne.s32.totalorder %s111, %s112
      %p123 = scmp.eq.s32.totalorder %s19, 0
      %p124 = por %p122, %p123
      %p125 = scmp.ne.s32.totalorder %s111, %s112
      %p126 = scmp.eq.s32.totalorder %s20, 1
      %p127 = por %p125, %p126
      %p129 = scmp.ne.s32.totalorder %s112, %s128
      %p130 = scmp.eq.s32.totalorder %s20, 0
      %p131 = por %p129, %p130
      %s132 = ssub.s32 %s14, %s21
      %p133 = scmp.eq.s32.totalorder %s132, 0
      %s135 = sadd.s32 %s134, 1
      %s136 = scalar_select %p133, %s134, %s135
      %p139 = pneg %p133
      %p140 = scmp.eq.s32.totalorder %s14, 1
      %p141 = por %p139, %p140
      %p142 = scmp.ne.s32.totalorder %s134, %s137
      %p143 = scmp.eq.s32.totalorder %s14, 0
      %p144 = por %p142, %p143
      %p145 = scmp.ne.s32.totalorder %s134, %s137
      %p146 = scmp.eq.s32.totalorder %s19, 1
      %p147 = por %p145, %p146
      %p148 = scmp.ne.s32.totalorder %s137, %s138
      %p149 = scmp.eq.s32.totalorder %s19, 0
      %p150 = por %p148, %p149
      %p151 = scmp.ne.s32.totalorder %s137, %s138
      %p152 = scmp.eq.s32.totalorder %s20, 1
      %p153 = por %p151, %p152
      %p155 = scmp.ne.s32.totalorder %s138, %s154
      %p156 = scmp.eq.s32.totalorder %s20, 0
      %p157 = por %p155, %p156
      %p158 = scmp.le.s32.totalorder 1, %s14
      %p159 = scmp.lt.s32.totalorder %s14, 3
      %p160 = pnand %p158, %p159
      %p161 = pneg %p160
      // Predicated region
      $region9: #{detect_forward.1} parent=5 // pred_check
        _
      $region10: #{detect_forward.1} parent=5 // pred_check_branch
        %163 = sbr.rel (%p160) target = $region12
      $region11: #{detect_forward.1} parent=5 // pred_region
        %s164 = ssub.s32 %s14, 1
        // Predicated region
        $region13: #{detect_forward.1} parent=11 // pred_check
          %p165 = pneg %p35
        $region14: #{detect_forward.1} parent=11 // pred_check_branch
          %167 = sbr.rel (%p165) target = $region16
        $region15: #{detect_forward.1} parent=11 // pred_region
          %s169 = ssub.s32 64, 64
          %170 = vsyncadd [#allocation3], %s169
          %s172 = sshll.u32 %s0, 4
          %s173 = int_to_ptr.vmem [resolvable:$true] %s172
          %175 = dma.vmem_to_smem %s173, 64, [#allocation2], [#allocation3]
        $region16: #{detect_forward.1} parent=11 // pred_fallthru
          _
        // Predicated region
        $region17: #{detect_forward.1} parent=11 // pred_check
          %p176 = pneg %p56
        $region18: #{detect_forward.1} parent=11 // pred_check_branch
          %178 = sbr.rel (%p176) target = $region20
        $region19: #{detect_forward.1} parent=11 // pred_region
          %s180 = ssub.s32 16, 16
          %181 = vsyncadd [#allocation5], %s180
          %s183 = sshll.u32 %s1, 4
          %s184 = int_to_ptr.vmem [resolvable:$true] %s183
          %186 = dma.vmem_to_smem %s184, 16, [#allocation4], [#allocation5]
        $region20: #{detect_forward.1} parent=11 // pred_fallthru
          _
        // Predicated region
        $region21: #{detect_forward.1} parent=11 // pred_check
          %p187 = pneg %p77
        $region22: #{detect_forward.1} parent=11 // pred_check_branch
          %189 = sbr.rel (%p187) target = $region24
        $region23: #{detect_forward.1} parent=11 // pred_region
          %s191 = ssub.s32 128, 128
          %192 = vsyncadd [#allocation5], %s191
          %s194 = sshll.u32 %s2, 4
          %s195 = int_to_ptr.vmem [resolvable:$true] %s194
          %197 = dma.vmem_to_smem %s195, 128, [#allocation6], [#allocation5]
        $region24: #{detect_forward.1} parent=11 // pred_fallthru
          _
        // Predicated region
        $region25: #{detect_forward.1} parent=11 // pred_check
          %p198 = pneg %p98
        $region26: #{detect_forward.1} parent=11 // pred_check_branch
          %200 = sbr.rel (%p198) target = $region28
        $region27: #{detect_forward.1} parent=11 // pred_region
          %s202 = ssub.s32 16, 16
          %203 = vsyncadd [#allocation8], %s202
          %s205 = sshll.u32 %s3, 4
          %s206 = int_to_ptr.vmem [resolvable:$true] %s205
          %208 = dma.vmem_to_smem %s206, 16, [#allocation7], [#allocation8]
        $region28: #{detect_forward.1} parent=11 // pred_fallthru
          _
      $region12: #{detect_forward.1} parent=5 // pred_fallthru
        _
      %p209 = scmp.lt.s32.totalorder %s14, 2
      // Predicated region
      $region29: #{detect_forward.1} parent=5 // pred_check
        %p210 = pneg %p209
      $region30: #{detect_forward.1} parent=5 // pred_check_branch
        %212 = sbr.rel (%p210) target = $region32
      $region31: #{detect_forward.1} parent=5 // pred_region
        // Predicated region
        $region33: #{detect_forward.1} parent=31 // pred_check
          %p213 = pneg %p118
        $region34: #{detect_forward.1} parent=31 // pred_check_branch
          %215 = sbr.rel (%p213) target = $region36
        $region35: #{detect_forward.1} parent=31 // pred_region
          %s216 = sand.u32 %s108, 1
          %s217 = sand.u32 %s108, 1
          %s218 = smul.addr %s217, 8
          %s219 = scalar_lea.vmem [#allocation9], %s218
          %s220 = smul.addr %s14, 4
          %s221 = scalar_lea.vmem %s4, %s220
          // Predicated region
          $region37: #{detect_forward.1} parent=35 // pred_check
            _
          $region38: #{detect_forward.1} parent=35 // pred_check_branch
            %223 = sbr.rel (0) target = $region40
          $region39: #{detect_forward.1} parent=35 // pred_region
            // Predicated region
            $region41: #{detect_forward.1} parent=39 // pred_check
              _
            $region42: #{detect_forward.1} parent=39 // pred_check_branch
              %225 = sbr.rel target = $region44
            $region43: #{detect_forward.1} parent=39 // pred_region
              // Predicated region
              $region56: #{detect_forward.1} parent=43 // pred_check
                _
              $region57: #{detect_forward.1} parent=43 // pred_check_branch
                %242 = sbr.rel (0) target = $region59
              $region58: #{detect_forward.1} parent=43 // pred_region
                loop: start=0, step=1, limit=1
                $region60: #{detect_forward.1} parent=58 // loop_pre_header
                  _
                $region61: #{detect_forward.1} parent=58 // loop_header
                  %s244 = sphi 0, %s248
                  %p245 = scmp.ge.s32.totalorder %s244, 1
                  %s249 = sphi %s221, %s221
                  %s250 = sphi %s219, %s219
                $region62: #{detect_forward.1} parent=58 // loop_header_branch
                  %247 = sbr.rel (%p245) target = $region66
                $region63: #{detect_forward.1} parent=58 // loop_body
                  _
                $region64: #{detect_forward.1} parent=58 // loop_footer
                  %s248 = sadd.s32 1, %s244
                $region65: #{detect_forward.1} parent=58 // loop_footer_branch
                  %243 = sbr.rel target = $region61
                $region66: #{detect_forward.1} parent=58 // loop_exit
                  _
                loop: start=0, step=1, limit=1
                $region67: #{detect_forward.1} parent=58 // loop_pre_header
                  _
                $region68: #{detect_forward.1} parent=58 // loop_header
                  %s253 = sphi 0, %s257
                  %p254 = scmp.ge.s32.totalorder %s253, 1
                  %s258 = sphi %s221, %s221
                  %s259 = sphi %s219, %s219
                $region69: #{detect_forward.1} parent=58 // loop_header_branch
                  %256 = sbr.rel (%p254) target = $region73
                $region70: #{detect_forward.1} parent=58 // loop_body
                  %v260 = vld [vmem:[%s258] sm:$0xf]
                  %261 = vst [vmem:[%s259] sm:$0xf] %v260
                  %v262 = vld [vmem:[%s258 + $0x8] sm:$0xf]
                  %263 = vst [vmem:[%s259 + $0x4] sm:$0xf] %v262
                $region71: #{detect_forward.1} parent=58 // loop_footer
                  %s257 = sadd.s32 1, %s253
                $region72: #{detect_forward.1} parent=58 // loop_footer_branch
                  %252 = sbr.rel target = $region68
                $region73: #{detect_forward.1} parent=58 // loop_exit
                  _
              $region59: #{detect_forward.1} parent=43 // pred_fallthru
                _
            $region44: #{detect_forward.1} parent=39 // pred_fallthru
              _
            // Predicated region
            $region45: #{detect_forward.1} parent=39 // pred_check
              _
            $region46: #{detect_forward.1} parent=39 // pred_check_branch
              %227 = sbr.rel (0) target = $region48
            $region47: #{detect_forward.1} parent=39 // pred_region
              loop: start=0, step=1, limit=1
              $region49: #{detect_forward.1} parent=47 // loop_pre_header
                _
              $region50: #{detect_forward.1} parent=47 // loop_header
                %s230 = sphi 0, %s234
                %p231 = scmp.ge.s32.totalorder %s230, 1
                %s235 = sphi %s221, %s221
                %s236 = sphi %s219, %s219
              $region51: #{detect_forward.1} parent=47 // loop_header_branch
                %233 = sbr.rel (%p231) target = $region55
              $region52: #{detect_forward.1} parent=47 // loop_body
                %v237 = vld [vmem:[%s235] sm:$0xf]
                %238 = vst [vmem:[%s236] sm:$0xf] %v237
                %v239 = vld [vmem:[%s235 + $0x8] sm:$0xf]
                %240 = vst [vmem:[%s236 + $0x4] sm:$0xf] %v239
              $region53: #{detect_forward.1} parent=47 // loop_footer
                %s234 = sadd.s32 1, %s230
              $region54: #{detect_forward.1} parent=47 // loop_footer_branch
                %229 = sbr.rel target = $region50
              $region55: #{detect_forward.1} parent=47 // loop_exit
                _
            $region48: #{detect_forward.1} parent=39 // pred_fallthru
              _
          $region40: #{detect_forward.1} parent=35 // pred_fallthru
            _
          %264 = vnop
        $region36: #{detect_forward.1} parent=31 // pred_fallthru
          _
      $region32: #{detect_forward.1} parent=5 // pred_fallthru
        _
      %p265 = scmp.le.s32.totalorder 1, %s14
      %p266 = scmp.lt.s32.totalorder %s14, 3
      %p267 = pnand %p265, %p266
      %p268 = pneg %p267
      // Predicated region
      $region74: #{detect_forward.1} parent=5 // pred_check
        _
      $region75: #{detect_forward.1} parent=5 // pred_check_branch
        %270 = sbr.rel (%p267) target = $region77
      $region76: #{detect_forward.1} parent=5 // pred_region
        %s271 = ssub.s32 %s14, 1
        // Predicated region
        $region78: #{detect_forward.1} parent=76 // pred_check
          %p272 = pneg %p35
        $region79: #{detect_forward.1} parent=76 // pred_check_branch
          %274 = sbr.rel (%p272) target = $region81
        $region80: #{detect_forward.1} parent=76 // pred_region
          %275 = dma.done [#allocation3], 64
        $region81: #{detect_forward.1} parent=76 // pred_fallthru
          _
        // Predicated region
        $region82: #{detect_forward.1} parent=76 // pred_check
          %p276 = pneg %p56
        $region83: #{detect_forward.1} parent=76 // pred_check_branch
          %278 = sbr.rel (%p276) target = $region85
        $region84: #{detect_forward.1} parent=76 // pred_region
          %279 = dma.done [#allocation5], 16
        $region85: #{detect_forward.1} parent=76 // pred_fallthru
          _
        // Predicated region
        $region86: #{detect_forward.1} parent=76 // pred_check
          %p280 = pneg %p77
        $region87: #{detect_forward.1} parent=76 // pred_check_branch
          %282 = sbr.rel (%p280) target = $region89
        $region88: #{detect_forward.1} parent=76 // pred_region
          %283 = dma.done [#allocation5], 128
        $region89: #{detect_forward.1} parent=76 // pred_fallthru
          _
        // Predicated region
        $region90: #{detect_forward.1} parent=76 // pred_check
          %p284 = pneg %p98
        $region91: #{detect_forward.1} parent=76 // pred_check_branch
          %286 = sbr.rel (%p284) target = $region93
        $region92: #{detect_forward.1} parent=76 // pred_region
          %287 = dma.done [#allocation8], 16
        $region93: #{detect_forward.1} parent=76 // pred_fallthru
          _
        %s288 = sand.u32 %s111, 1
        %s289 = sand.u32 %s111, 1
        %s290 = smul.addr %s289, 8
        %s291 = scalar_lea.vmem [#allocation9], %s290
        // Predicated region
        $region94: #{detect_forward.1} parent=76 // pred_check
          %p292 = pneg %p124
        $region95: #{detect_forward.1} parent=76 // pred_check_branch
          %294 = sbr.rel (%p292) target = $region97
        $region96: #{detect_forward.1} parent=76 // pred_region
          _
        $region97: #{detect_forward.1} parent=76 // pred_fallthru
          _
        %295 = sfence
        %p296 = pneg %p35
        %p297 = pneg %p32
        %p298 = pneg %p56
        %p299 = pneg %p53
        %p300 = pneg %p77
        %p301 = pneg %p74
        %p302 = pneg %p98
        %p303 = pneg %p95
        %s304 = sand.u32 %s111, 1
        %s305 = sand.u32 %s111, 1
        %s306 = smul.addr %s305, 8
        %s307 = scalar_lea.vmem [#allocation9], %s306
        %p308 = pneg %p124
        %p309 = pneg %p121
        %p310 = pneg %p150
        %p311 = pneg %p147
        %s312 = sand.u32 %s137, 1
        %s313 = sand.u32 %s137, 1
        %s314 = smul.addr %s313, 16
        %s315 = scalar_lea.vmem [#allocation10], %s314
        %v316 = vld [vmem:[%s291] sm:$0xf]
        %s317 = sld [smem:[#allocation2]]
        %v318 = vstv %s317
        %v319 = vmul.f32 %v316, %v318
        %s320 = sld [smem:[#allocation2 + $0x1]]
        %v321 = vstv %s320
        %v322 = vmul.f32 %v316, %v321
        %v324 = vrot.slane %v322, 1
        %v326 = vadd.f32 %v319, %v324
        %s327 = sld [smem:[#allocation2 + $0x2]]
        %v328 = vstv %s327
        %v329 = vmul.f32 %v316, %v328
        %v331 = vrot.slane %v329, 2
        %v333 = vadd.f32 %v326, %v331
        %s334 = sld [smem:[#allocation2 + $0x3]]
        %v335 = vstv %s334
        %v336 = vmul.f32 %v316, %v335
        %v338 = vrot.slane %v336, 3
        %v340 = vadd.f32 %v333, %v338
        %s341 = sld [smem:[#allocation4]]
        %v342 = vstv %s341
        %v343 = vadd.f32 %v340, %v342
        %v344 = vxor.u32 %v343, 2147483648
        %v345 = vmul.f32 %v344, 1.442695
        %v346 = vpow.pop %v345
        %v347 = vadd.f32 %v346, 1.0
        %v348 = vrcp.pop %v347
        %v349 = vmul.f32 1.0, %v348
        %v350 = vmul.f32 %v343, %v349
        %s351 = sld [smem:[#allocation2 + $0x80]]
        %v352 = vstv %s351
        %v353 = vmul.f32 %v316, %v352
        %s354 = sld [smem:[#allocation2 + $0x81]]
        %v355 = vstv %s354
        %v356 = vmul.f32 %v316, %v355
        %v358 = vrot.slane %v356, 1
        %v360 = vadd.f32 %v353, %v358
        %s361 = sld [smem:[#allocation2 + $0x82]]
        %v362 = vstv %s361
        %v363 = vmul.f32 %v316, %v362
        %v365 = vrot.slane %v363, 2
        %v367 = vadd.f32 %v360, %v365
        %s368 = sld [smem:[#allocation2 + $0x83]]
        %v369 = vstv %s368
        %v370 = vmul.f32 %v316, %v369
        %v372 = vrot.slane %v370, 3
        %v374 = vadd.f32 %v367, %v372
        %s375 = sld [smem:[#allocation4 + $0x1]]
        %v376 = vstv %s375
        %v377 = vadd.f32 %v374, %v376
        %v378 = vxor.u32 %v377, 2147483648
        %v379 = vmul.f32 %v378, 1.442695
        %v380 = vpow.pop %v379
        %v381 = vadd.f32 %v380, 1.0
        %v382 = vrcp.pop %v381
        %v383 = vmul.f32 1.0, %v382
        %v384 = vmul.f32 %v377, %v383
        %s385 = sld [smem:[#allocation2 + $0x100]]
        %v386 = vstv %s385
        %v387 = vmul.f32 %v316, %v386
        %s388 = sld [smem:[#allocation2 + $0x101]]
        %v389 = vstv %s388
        %v390 = vmul.f32 %v316, %v389
        %v392 = vrot.slane %v390, 1
        %v394 = vadd.f32 %v387, %v392
        %s395 = sld [smem:[#allocation2 + $0x102]]
        %v396 = vstv %s395
        %v397 = vmul.f32 %v316, %v396
        %v399 = vrot.slane %v397, 2
        %v401 = vadd.f32 %v394, %v399
        %s402 = sld [smem:[#allocation2 + $0x103]]
        %v403 = vstv %s402
        %v404 = vmul.f32 %v316, %v403
        %v406 = vrot.slane %v404, 3
        %v408 = vadd.f32 %v401, %v406
        %s409 = sld [smem:[#allocation4 + $0x2]]
        %v410 = vstv %s409
        %v411 = vadd.f32 %v408, %v410
        %v412 = vxor.u32 %v411, 2147483648
        %v413 = vmul.f32 %v412, 1.442695
        %v414 = vpow.pop %v413
        %v415 = vadd.f32 %v414, 1.0
        %v416 = vrcp.pop %v415
        %v417 = vmul.f32 1.0, %v416
        %v418 = vmul.f32 %v411, %v417
        %s419 = sld [smem:[#allocation2 + $0x180]]
        %v420 = vstv %s419
        %v421 = vmul.f32 %v316, %v420
        %s422 = sld [smem:[#allocation2 + $0x181]]
        %v423 = vstv %s422
        %v424 = vmul.f32 %v316, %v423
        %v426 = vrot.slane %v424, 1
        %v428 = vadd.f32 %v421, %v426
        %s429 = sld [smem:[#allocation2 + $0x182]]
        %v430 = vstv %s429
        %v431 = vmul.f32 %v316, %v430
        %v433 = vrot.slane %v431, 2
        %v435 = vadd.f32 %v428, %v433
        %s436 = sld [smem:[#allocation2 + $0x183]]
        %v437 = vstv %s436
        %v438 = vmul.f32 %v316, %v437
        %v440 = vrot.slane %v438, 3
        %v442 = vadd.f32 %v435, %v440
        %s443 = sld [smem:[#allocation4 + $0x3]]
        %v444 = vstv %s443
        %v445 = vadd.f32 %v442, %v444
        %v446 = vxor.u32 %v445, 2147483648
        %v447 = vmul.f32 %v446, 1.442695
        %v448 = vpow.pop %v447
        %v449 = vadd.f32 %v448, 1.0
        %v450 = vrcp.pop %v449
        %v451 = vmul.f32 1.0, %v450
        %v452 = vmul.f32 %v445, %v451
        %v453 = vmul.f32 %v350, %v318
        %v454 = vmul.f32 %v384, %v321
        %v455 = vadd.f32 %v453, %v454
        %v456 = vmul.f32 %v418, %v328
        %v457 = vadd.f32 %v455, %v456
        %v458 = vmul.f32 %v452, %v335
        %v459 = vadd.f32 %v457, %v458
        %v460 = vadd.f32 %v459, %v342
        %v461 = vxor.u32 %v460, 2147483648
        %v462 = vmul.f32 %v461, 1.442695
        %v463 = vpow.pop %v462
        %v464 = vadd.f32 %v463, 1.0
        %v465 = vrcp.pop %v464
        %v466 = vmul.f32 1.0, %v465
        %v467 = vmul.f32 %v460, %v466
        %v468 = vmul.f32 %v350, %v352
        %v469 = vmul.f32 %v384, %v355
        %v470 = vadd.f32 %v468, %v469
        %v471 = vmul.f32 %v418, %v362
        %v472 = vadd.f32 %v470, %v471
        %v473 = vmul.f32 %v452, %v369
        %v474 = vadd.f32 %v472, %v473
        %v475 = vadd.f32 %v474, %v376
        %v476 = vxor.u32 %v475, 2147483648
        %v477 = vmul.f32 %v476, 1.442695
        %v478 = vpow.pop %v477
        %v479 = vadd.f32 %v478, 1.0
        %v480 = vrcp.pop %v479
        %v481 = vmul.f32 1.0, %v480
        %v482 = vmul.f32 %v475, %v481
        %v483 = vmul.f32 %v350, %v386
        %v484 = vmul.f32 %v384, %v389
        %v485 = vadd.f32 %v483, %v484
        %v486 = vmul.f32 %v418, %v396
        %v487 = vadd.f32 %v485, %v486
        %v488 = vmul.f32 %v452, %v403
        %v489 = vadd.f32 %v487, %v488
        %v490 = vadd.f32 %v489, %v410
        %v491 = vxor.u32 %v490, 2147483648
        %v492 = vmul.f32 %v491, 1.442695
        %v493 = vpow.pop %v492
        %v494 = vadd.f32 %v493, 1.0
        %v495 = vrcp.pop %v494
        %v496 = vmul.f32 1.0, %v495
        %v497 = vmul.f32 %v490, %v496
        %v498 = vmul.f32 %v350, %v420
        %v499 = vmul.f32 %v384, %v423
        %v500 = vadd.f32 %v498, %v499
        %v501 = vmul.f32 %v418, %v430
        %v502 = vadd.f32 %v500, %v501
        %v503 = vmul.f32 %v452, %v437
        %v504 = vadd.f32 %v502, %v503
        %v505 = vadd.f32 %v504, %v444
        %v506 = vxor.u32 %v505, 2147483648
        %v507 = vmul.f32 %v506, 1.442695
        %v508 = vpow.pop %v507
        %v509 = vadd.f32 %v508, 1.0
        %v510 = vrcp.pop %v509
        %v511 = vmul.f32 1.0, %v510
        %v512 = vmul.f32 %v505, %v511
        %s513 = sld [smem:[#allocation6]]
        %v514 = vstv %s513
        %v515 = vmul.f32 %v467, %v514
        %s516 = sld [smem:[#allocation6 + $0x1]]
        %v517 = vstv %s516
        %v518 = vmul.f32 %v482, %v517
        %v519 = vadd.f32 %v515, %v518
        %s520 = sld [smem:[#allocation6 + $0x2]]
        %v521 = vstv %s520
        %v522 = vmul.f32 %v497, %v521
        %v523 = vadd.f32 %v519, %v522
        %s524 = sld [smem:[#allocation6 + $0x3]]
        %v525 = vstv %s524
        %v526 = vmul.f32 %v512, %v525
        %v527 = vadd.f32 %v523, %v526
        %s528 = sld [smem:[#allocation7]]
        %v529 = vstv %s528
        %v530 = vadd.f32 %v527, %v529
        %s531 = sld [smem:[#allocation6 + $0x80]]
        %v532 = vstv %s531
        %v533 = vmul.f32 %v467, %v532
        %s534 = sld [smem:[#allocation6 + $0x81]]
        %v535 = vstv %s534
        %v536 = vmul.f32 %v482, %v535
        %v537 = vadd.f32 %v533, %v536
        %s538 = sld [smem:[#allocation6 + $0x82]]
        %v539 = vstv %s538
        %v540 = vmul.f32 %v497, %v539
        %v541 = vadd.f32 %v537, %v540
        %s542 = sld [smem:[#allocation6 + $0x83]]
        %v543 = vstv %s542
        %v544 = vmul.f32 %v512, %v543
        %v545 = vadd.f32 %v541, %v544
        %s546 = sld [smem:[#allocation7 + $0x1]]
        %v547 = vstv %s546
        %v548 = vadd.f32 %v545, %v547
        %s549 = sld [smem:[#allocation6 + $0x100]]
        %v550 = vstv %s549
        %v551 = vmul.f32 %v467, %v550
        %s552 = sld [smem:[#allocation6 + $0x101]]
        %v553 = vstv %s552
        %v554 = vmul.f32 %v482, %v553
        %v555 = vadd.f32 %v551, %v554
        %s556 = sld [smem:[#allocation6 + $0x102]]
        %v557 = vstv %s556
        %v558 = vmul.f32 %v497, %v557
        %v559 = vadd.f32 %v555, %v558
        %s560 = sld [smem:[#allocation6 + $0x103]]
        %v561 = vstv %s560
        %v562 = vmul.f32 %v512, %v561
        %v563 = vadd.f32 %v559, %v562
        %s564 = sld [smem:[#allocation7 + $0x2]]
        %v565 = vstv %s564
        %v566 = vadd.f32 %v563, %v565
        %s567 = sld [smem:[#allocation6 + $0x180]]
        %v568 = vstv %s567
        %v569 = vmul.f32 %v467, %v568
        %s570 = sld [smem:[#allocation6 + $0x181]]
        %v571 = vstv %s570
        %v572 = vmul.f32 %v482, %v571
        %v573 = vadd.f32 %v569, %v572
        %s574 = sld [smem:[#allocation6 + $0x182]]
        %v575 = vstv %s574
        %v576 = vmul.f32 %v497, %v575
        %v577 = vadd.f32 %v573, %v576
        %s578 = sld [smem:[#allocation6 + $0x183]]
        %v579 = vstv %s578
        %v580 = vmul.f32 %v512, %v579
        %v581 = vadd.f32 %v577, %v580
        %s582 = sld [smem:[#allocation7 + $0x3]]
        %v583 = vstv %s582
        %v584 = vadd.f32 %v581, %v583
        %s585 = sld [smem:[#allocation6 + $0x200]]
        %v586 = vstv %s585
        %v587 = vmul.f32 %v467, %v586
        %s588 = sld [smem:[#allocation6 + $0x201]]
        %v589 = vstv %s588
        %v590 = vmul.f32 %v482, %v589
        %v591 = vadd.f32 %v587, %v590
        %s592 = sld [smem:[#allocation6 + $0x202]]
        %v593 = vstv %s592
        %v594 = vmul.f32 %v497, %v593
        %v595 = vadd.f32 %v591, %v594
        %s596 = sld [smem:[#allocation6 + $0x203]]
        %v597 = vstv %s596
        %v598 = vmul.f32 %v512, %v597
        %v599 = vadd.f32 %v595, %v598
        %s600 = sld [smem:[#allocation7 + $0x4]]
        %v601 = vstv %s600
        %v602 = vadd.f32 %v599, %v601
        %s603 = sld [smem:[#allocation6 + $0x280]]
        %v604 = vstv %s603
        %v605 = vmul.f32 %v467, %v604
        %s606 = sld [smem:[#allocation6 + $0x281]]
        %v607 = vstv %s606
        %v608 = vmul.f32 %v482, %v607
        %v609 = vadd.f32 %v605, %v608
        %s610 = sld [smem:[#allocation6 + $0x282]]
        %v611 = vstv %s610
        %v612 = vmul.f32 %v497, %v611
        %v613 = vadd.f32 %v609, %v612
        %s614 = sld [smem:[#allocation6 + $0x283]]
        %v615 = vstv %s614
        %v616 = vmul.f32 %v512, %v615
        %v617 = vadd.f32 %v613, %v616
        %s618 = sld [smem:[#allocation7 + $0x5]]
        %v619 = vstv %s618
        %v620 = vadd.f32 %v617, %v619
        %s621 = sld [smem:[#allocation6 + $0x300]]
        %v622 = vstv %s621
        %v623 = vmul.f32 %v467, %v622
        %s624 = sld [smem:[#allocation6 + $0x301]]
        %v625 = vstv %s624
        %v626 = vmul.f32 %v482, %v625
        %v627 = vadd.f32 %v623, %v626
        %s628 = sld [smem:[#allocation6 + $0x302]]
        %v629 = vstv %s628
        %v630 = vmul.f32 %v497, %v629
        %v631 = vadd.f32 %v627, %v630
        %s632 = sld [smem:[#allocation6 + $0x303]]
        %v633 = vstv %s632
        %v634 = vmul.f32 %v512, %v633
        %v635 = vadd.f32 %v631, %v634
        %s636 = sld [smem:[#allocation7 + $0x6]]
        %v637 = vstv %s636
        %v638 = vadd.f32 %v635, %v637
        %s639 = sld [smem:[#allocation6 + $0x380]]
        %v640 = vstv %s639
        %v641 = vmul.f32 %v467, %v640
        %s642 = sld [smem:[#allocation6 + $0x381]]
        %v643 = vstv %s642
        %v644 = vmul.f32 %v482, %v643
        %v645 = vadd.f32 %v641, %v644
        %s646 = sld [smem:[#allocation6 + $0x382]]
        %v647 = vstv %s646
        %v648 = vmul.f32 %v497, %v647
        %v649 = vadd.f32 %v645, %v648
        %s650 = sld [smem:[#allocation6 + $0x383]]
        %v651 = vstv %s650
        %v652 = vmul.f32 %v512, %v651
        %v653 = vadd.f32 %v649, %v652
        %s654 = sld [smem:[#allocation7 + $0x7]]
        %v655 = vstv %s654
        %v656 = vadd.f32 %v653, %v655
        %v658 = vrot.slane %v548, 7
        %v661 = vrot.slane %v566, 6
        %v664 = vrot.slane %v584, 5
        %v667 = vrot.slane %v602, 4
        %v670 = vrot.slane %v620, 3
        %v673 = vrot.slane %v638, 2
        %v676 = vrot.slane %v656, 1
        %vm678 = vcmask 1040384
        %v679 = vsel %vm678, %v530, %v658
        %vm680 = vcmask 1041408
        %v681 = vsel %vm680, %v679, %v661
        %vm682 = vcmask 1042432
        %v683 = vsel %vm682, %v681, %v664
        %vm684 = vcmask 1043456
        %v685 = vsel %vm684, %v683, %v667
        %vm686 = vcmask 1044480
        %v687 = vsel %vm686, %v685, %v670
        %vm688 = vcmask 1045504
        %v689 = vsel %vm688, %v687, %v673
        %vm690 = vcmask 1046528
        %v691 = vsel %vm690, %v689, %v676
        %692 = vst [vmem:[%s315] sm:$0xff] %v691
        %s693 = scalar_lea.vmem %s291, 4 [#allocation9]
        %v694 = vld [vmem:[%s693] sm:$0xf]
        %s695 = sld [smem:[#allocation2]]
        %v696 = vstv %s695
        %v697 = vmul.f32 %v694, %v696
        %s698 = sld [smem:[#allocation2 + $0x1]]
        %v699 = vstv %s698
        %v700 = vmul.f32 %v694, %v699
        %v702 = vrot.slane %v700, 1
        %v704 = vadd.f32 %v697, %v702
        %s705 = sld [smem:[#allocation2 + $0x2]]
        %v706 = vstv %s705
        %v707 = vmul.f32 %v694, %v706
        %v709 = vrot.slane %v707, 2
        %v711 = vadd.f32 %v704, %v709
        %s712 = sld [smem:[#allocation2 + $0x3]]
        %v713 = vstv %s712
        %v714 = vmul.f32 %v694, %v713
        %v716 = vrot.slane %v714, 3
        %v718 = vadd.f32 %v711, %v716
        %s719 = sld [smem:[#allocation4]]
        %v720 = vstv %s719
        %v721 = vadd.f32 %v718, %v720
        %v722 = vxor.u32 %v721, 2147483648
        %v723 = vmul.f32 %v722, 1.442695
        %v724 = vpow.pop %v723
        %v725 = vadd.f32 %v724, 1.0
        %v726 = vrcp.pop %v725
        %v727 = vmul.f32 1.0, %v726
        %v728 = vmul.f32 %v721, %v727
        %s729 = sld [smem:[#allocation2 + $0x80]]
        %v730 = vstv %s729
        %v731 = vmul.f32 %v694, %v730
        %s732 = sld [smem:[#allocation2 + $0x81]]
        %v733 = vstv %s732
        %v734 = vmul.f32 %v694, %v733
        %v736 = vrot.slane %v734, 1
        %v738 = vadd.f32 %v731, %v736
        %s739 = sld [smem:[#allocation2 + $0x82]]
        %v740 = vstv %s739
        %v741 = vmul.f32 %v694, %v740
        %v743 = vrot.slane %v741, 2
        %v745 = vadd.f32 %v738, %v743
        %s746 = sld [smem:[#allocation2 + $0x83]]
        %v747 = vstv %s746
        %v748 = vmul.f32 %v694, %v747
        %v750 = vrot.slane %v748, 3
        %v752 = vadd.f32 %v745, %v750
        %s753 = sld [smem:[#allocation4 + $0x1]]
        %v754 = vstv %s753
        %v755 = vadd.f32 %v752, %v754
        %v756 = vxor.u32 %v755, 2147483648
        %v757 = vmul.f32 %v756, 1.442695
        %v758 = vpow.pop %v757
        %v759 = vadd.f32 %v758, 1.0
        %v760 = vrcp.pop %v759
        %v761 = vmul.f32 1.0, %v760
        %v762 = vmul.f32 %v755, %v761
        %s763 = sld [smem:[#allocation2 + $0x100]]
        %v764 = vstv %s763
        %v765 = vmul.f32 %v694, %v764
        %s766 = sld [smem:[#allocation2 + $0x101]]
        %v767 = vstv %s766
        %v768 = vmul.f32 %v694, %v767
        %v770 = vrot.slane %v768, 1
        %v772 = vadd.f32 %v765, %v770
        %s773 = sld [smem:[#allocation2 + $0x102]]
        %v774 = vstv %s773
        %v775 = vmul.f32 %v694, %v774
        %v777 = vrot.slane %v775, 2
        %v779 = vadd.f32 %v772, %v777
        %s780 = sld [smem:[#allocation2 + $0x103]]
        %v781 = vstv %s780
        %v782 = vmul.f32 %v694, %v781
        %v784 = vrot.slane %v782, 3
        %v786 = vadd.f32 %v779, %v784
        %s787 = sld [smem:[#allocation4 + $0x2]]
        %v788 = vstv %s787
        %v789 = vadd.f32 %v786, %v788
        %v790 = vxor.u32 %v789, 2147483648
        %v791 = vmul.f32 %v790, 1.442695
        %v792 = vpow.pop %v791
        %v793 = vadd.f32 %v792, 1.0
        %v794 = vrcp.pop %v793
        %v795 = vmul.f32 1.0, %v794
        %v796 = vmul.f32 %v789, %v795
        %s797 = sld [smem:[#allocation2 + $0x180]]
        %v798 = vstv %s797
        %v799 = vmul.f32 %v694, %v798
        %s800 = sld [smem:[#allocation2 + $0x181]]
        %v801 = vstv %s800
        %v802 = vmul.f32 %v694, %v801
        %v804 = vrot.slane %v802, 1
        %v806 = vadd.f32 %v799, %v804
        %s807 = sld [smem:[#allocation2 + $0x182]]
        %v808 = vstv %s807
        %v809 = vmul.f32 %v694, %v808
        %v811 = vrot.slane %v809, 2
        %v813 = vadd.f32 %v806, %v811
        %s814 = sld [smem:[#allocation2 + $0x183]]
        %v815 = vstv %s814
        %v816 = vmul.f32 %v694, %v815
        %v818 = vrot.slane %v816, 3
        %v820 = vadd.f32 %v813, %v818
        %s821 = sld [smem:[#allocation4 + $0x3]]
        %v822 = vstv %s821
        %v823 = vadd.f32 %v820, %v822
        %v824 = vxor.u32 %v823, 2147483648
        %v825 = vmul.f32 %v824, 1.442695
        %v826 = vpow.pop %v825
        %v827 = vadd.f32 %v826, 1.0
        %v828 = vrcp.pop %v827
        %v829 = vmul.f32 1.0, %v828
        %v830 = vmul.f32 %v823, %v829
        %v831 = vmul.f32 %v728, %v696
        %v832 = vmul.f32 %v762, %v699
        %v833 = vadd.f32 %v831, %v832
        %v834 = vmul.f32 %v796, %v706
        %v835 = vadd.f32 %v833, %v834
        %v836 = vmul.f32 %v830, %v713
        %v837 = vadd.f32 %v835, %v836
        %v838 = vadd.f32 %v837, %v720
        %v839 = vxor.u32 %v838, 2147483648
        %v840 = vmul.f32 %v839, 1.442695
        %v841 = vpow.pop %v840
        %v842 = vadd.f32 %v841, 1.0
        %v843 = vrcp.pop %v842
        %v844 = vmul.f32 1.0, %v843
        %v845 = vmul.f32 %v838, %v844
        %v846 = vmul.f32 %v728, %v730
        %v847 = vmul.f32 %v762, %v733
        %v848 = vadd.f32 %v846, %v847
        %v849 = vmul.f32 %v796, %v740
        %v850 = vadd.f32 %v848, %v849
        %v851 = vmul.f32 %v830, %v747
        %v852 = vadd.f32 %v850, %v851
        %v853 = vadd.f32 %v852, %v754
        %v854 = vxor.u32 %v853, 2147483648
        %v855 = vmul.f32 %v854, 1.442695
        %v856 = vpow.pop %v855
        %v857 = vadd.f32 %v856, 1.0
        %v858 = vrcp.pop %v857
        %v859 = vmul.f32 1.0, %v858
        %v860 = vmul.f32 %v853, %v859
        %v861 = vmul.f32 %v728, %v764
        %v862 = vmul.f32 %v762, %v767
        %v863 = vadd.f32 %v861, %v862
        %v864 = vmul.f32 %v796, %v774
        %v865 = vadd.f32 %v863, %v864
        %v866 = vmul.f32 %v830, %v781
        %v867 = vadd.f32 %v865, %v866
        %v868 = vadd.f32 %v867, %v788
        %v869 = vxor.u32 %v868, 2147483648
        %v870 = vmul.f32 %v869, 1.442695
        %v871 = vpow.pop %v870
        %v872 = vadd.f32 %v871, 1.0
        %v873 = vrcp.pop %v872
        %v874 = vmul.f32 1.0, %v873
        %v875 = vmul.f32 %v868, %v874
        %v876 = vmul.f32 %v728, %v798
        %v877 = vmul.f32 %v762, %v801
        %v878 = vadd.f32 %v876, %v877
        %v879 = vmul.f32 %v796, %v808
        %v880 = vadd.f32 %v878, %v879
        %v881 = vmul.f32 %v830, %v815
        %v882 = vadd.f32 %v880, %v881
        %v883 = vadd.f32 %v882, %v822
        %v884 = vxor.u32 %v883, 2147483648
        %v885 = vmul.f32 %v884, 1.442695
        %v886 = vpow.pop %v885
        %v887 = vadd.f32 %v886, 1.0
        %v888 = vrcp.pop %v887
        %v889 = vmul.f32 1.0, %v888
        %v890 = vmul.f32 %v883, %v889
        %s891 = sld [smem:[#allocation6]]
        %v892 = vstv %s891
        %v893 = vmul.f32 %v845, %v892
        %s894 = sld [smem:[#allocation6 + $0x1]]
        %v895 = vstv %s894
        %v896 = vmul.f32 %v860, %v895
        %v897 = vadd.f32 %v893, %v896
        %s898 = sld [smem:[#allocation6 + $0x2]]
        %v899 = vstv %s898
        %v900 = vmul.f32 %v875, %v899
        %v901 = vadd.f32 %v897, %v900
        %s902 = sld [smem:[#allocation6 + $0x3]]
        %v903 = vstv %s902
        %v904 = vmul.f32 %v890, %v903
        %v905 = vadd.f32 %v901, %v904
        %s906 = sld [smem:[#allocation7]]
        %v907 = vstv %s906
        %v908 = vadd.f32 %v905, %v907
        %s909 = sld [smem:[#allocation6 + $0x80]]
        %v910 = vstv %s909
        %v911 = vmul.f32 %v845, %v910
        %s912 = sld [smem:[#allocation6 + $0x81]]
        %v913 = vstv %s912
        %v914 = vmul.f32 %v860, %v913
        %v915 = vadd.f32 %v911, %v914
        %s916 = sld [smem:[#allocation6 + $0x82]]
        %v917 = vstv %s916
        %v918 = vmul.f32 %v875, %v917
        %v919 = vadd.f32 %v915, %v918
        %s920 = sld [smem:[#allocation6 + $0x83]]
        %v921 = vstv %s920
        %v922 = vmul.f32 %v890, %v921
        %v923 = vadd.f32 %v919, %v922
        %s924 = sld [smem:[#allocation7 + $0x1]]
        %v925 = vstv %s924
        %v926 = vadd.f32 %v923, %v925
        %s927 = sld [smem:[#allocation6 + $0x100]]
        %v928 = vstv %s927
        %v929 = vmul.f32 %v845, %v928
        %s930 = sld [smem:[#allocation6 + $0x101]]
        %v931 = vstv %s930
        %v932 = vmul.f32 %v860, %v931
        %v933 = vadd.f32 %v929, %v932
        %s934 = sld [smem:[#allocation6 + $0x102]]
        %v935 = vstv %s934
        %v936 = vmul.f32 %v875, %v935
        %v937 = vadd.f32 %v933, %v936
        %s938 = sld [smem:[#allocation6 + $0x103]]
        %v939 = vstv %s938
        %v940 = vmul.f32 %v890, %v939
        %v941 = vadd.f32 %v937, %v940
        %s942 = sld [smem:[#allocation7 + $0x2]]
        %v943 = vstv %s942
        %v944 = vadd.f32 %v941, %v943
        %s945 = sld [smem:[#allocation6 + $0x180]]
        %v946 = vstv %s945
        %v947 = vmul.f32 %v845, %v946
        %s948 = sld [smem:[#allocation6 + $0x181]]
        %v949 = vstv %s948
        %v950 = vmul.f32 %v860, %v949
        %v951 = vadd.f32 %v947, %v950
        %s952 = sld [smem:[#allocation6 + $0x182]]
        %v953 = vstv %s952
        %v954 = vmul.f32 %v875, %v953
        %v955 = vadd.f32 %v951, %v954
        %s956 = sld [smem:[#allocation6 + $0x183]]
        %v957 = vstv %s956
        %v958 = vmul.f32 %v890, %v957
        %v959 = vadd.f32 %v955, %v958
        %s960 = sld [smem:[#allocation7 + $0x3]]
        %v961 = vstv %s960
        %v962 = vadd.f32 %v959, %v961
        %s963 = sld [smem:[#allocation6 + $0x200]]
        %v964 = vstv %s963
        %v965 = vmul.f32 %v845, %v964
        %s966 = sld [smem:[#allocation6 + $0x201]]
        %v967 = vstv %s966
        %v968 = vmul.f32 %v860, %v967
        %v969 = vadd.f32 %v965, %v968
        %s970 = sld [smem:[#allocation6 + $0x202]]
        %v971 = vstv %s970
        %v972 = vmul.f32 %v875, %v971
        %v973 = vadd.f32 %v969, %v972
        %s974 = sld [smem:[#allocation6 + $0x203]]
        %v975 = vstv %s974
        %v976 = vmul.f32 %v890, %v975
        %v977 = vadd.f32 %v973, %v976
        %s978 = sld [smem:[#allocation7 + $0x4]]
        %v979 = vstv %s978
        %v980 = vadd.f32 %v977, %v979
        %s981 = sld [smem:[#allocation6 + $0x280]]
        %v982 = vstv %s981
        %v983 = vmul.f32 %v845, %v982
        %s984 = sld [smem:[#allocation6 + $0x281]]
        %v985 = vstv %s984
        %v986 = vmul.f32 %v860, %v985
        %v987 = vadd.f32 %v983, %v986
        %s988 = sld [smem:[#allocation6 + $0x282]]
        %v989 = vstv %s988
        %v990 = vmul.f32 %v875, %v989
        %v991 = vadd.f32 %v987, %v990
        %s992 = sld [smem:[#allocation6 + $0x283]]
        %v993 = vstv %s992
        %v994 = vmul.f32 %v890, %v993
        %v995 = vadd.f32 %v991, %v994
        %s996 = sld [smem:[#allocation7 + $0x5]]
        %v997 = vstv %s996
        %v998 = vadd.f32 %v995, %v997
        %s999 = sld [smem:[#allocation6 + $0x300]]
        %v1000 = vstv %s999
        %v1001 = vmul.f32 %v845, %v1000
        %s1002 = sld [smem:[#allocation6 + $0x301]]
        %v1003 = vstv %s1002
        %v1004 = vmul.f32 %v860, %v1003
        %v1005 = vadd.f32 %v1001, %v1004
        %s1006 = sld [smem:[#allocation6 + $0x302]]
        %v1007 = vstv %s1006
        %v1008 = vmul.f32 %v875, %v1007
        %v1009 = vadd.f32 %v1005, %v1008
        %s1010 = sld [smem:[#allocation6 + $0x303]]
        %v1011 = vstv %s1010
        %v1012 = vmul.f32 %v890, %v1011
        %v1013 = vadd.f32 %v1009, %v1012
        %s1014 = sld [smem:[#allocation7 + $0x6]]
        %v1015 = vstv %s1014
        %v1016 = vadd.f32 %v1013, %v1015
        %s1017 = sld [smem:[#allocation6 + $0x380]]
        %v1018 = vstv %s1017
        %v1019 = vmul.f32 %v845, %v1018
        %s1020 = sld [smem:[#allocation6 + $0x381]]
        %v1021 = vstv %s1020
        %v1022 = vmul.f32 %v860, %v1021
        %v1023 = vadd.f32 %v1019, %v1022
        %s1024 = sld [smem:[#allocation6 + $0x382]]
        %v1025 = vstv %s1024
        %v1026 = vmul.f32 %v875, %v1025
        %v1027 = vadd.f32 %v1023, %v1026
        %s1028 = sld [smem:[#allocation6 + $0x383]]
        %v1029 = vstv %s1028
        %v1030 = vmul.f32 %v890, %v1029
        %v1031 = vadd.f32 %v1027, %v1030
        %s1032 = sld [smem:[#allocation7 + $0x7]]
        %v1033 = vstv %s1032
        %v1034 = vadd.f32 %v1031, %v1033
        %v1036 = vrot.slane %v926, 7
        %v1039 = vrot.slane %v944, 6
        %v1042 = vrot.slane %v962, 5
        %v1045 = vrot.slane %v980, 4
        %v1048 = vrot.slane %v998, 3
        %v1051 = vrot.slane %v1016, 2
        %v1054 = vrot.slane %v1034, 1
        %v1056 = vsel %vm678, %v908, %v1036
        %v1057 = vsel %vm680, %v1056, %v1039
        %v1058 = vsel %vm682, %v1057, %v1042
        %v1059 = vsel %vm684, %v1058, %v1045
        %v1060 = vsel %vm686, %v1059, %v1048
        %v1061 = vsel %vm688, %v1060, %v1051
        %v1062 = vsel %vm690, %v1061, %v1054
        %s1063 = scalar_lea.vmem %s315, 8 [#allocation10]
        %1064 = vst [vmem:[%s1063] sm:$0xff] %v1062
        %s1065 = sand.u32 %s137, 1
        %s1066 = sand.u32 %s137, 1
        %s1067 = smul.addr %s1066, 16
        %s1068 = scalar_lea.vmem [#allocation10], %s1067
        // Predicated region
        $region98: #{detect_forward.1} parent=76 // pred_check
          %p1069 = pneg %p147
        $region99: #{detect_forward.1} parent=76 // pred_check_branch
          %1071 = sbr.rel (%p1069) target = $region101
        $region100: #{detect_forward.1} parent=76 // pred_region
          %s1072 = smul.addr %s19, 8
          %s1073 = scalar_lea.vmem %s5, %s1072
          // Predicated region
          $region102: #{detect_forward.1} parent=100 // pred_check
            _
          $region103: #{detect_forward.1} parent=100 // pred_check_branch
            %1075 = sbr.rel (0) target = $region105
          $region104: #{detect_forward.1} parent=100 // pred_region
            // Predicated region
            $region106: #{detect_forward.1} parent=104 // pred_check
              _
            $region107: #{detect_forward.1} parent=104 // pred_check_branch
              %1077 = sbr.rel (0) target = $region109
            $region108: #{detect_forward.1} parent=104 // pred_region
              // Predicated region
              $region121: #{detect_forward.1} parent=108 // pred_check
                _
              $region122: #{detect_forward.1} parent=108 // pred_check_branch
                %1094 = sbr.rel (0) target = $region124
              $region123: #{detect_forward.1} parent=108 // pred_region
                loop: start=0, step=1, limit=1
                $region125: #{detect_forward.1} parent=123 // loop_pre_header
                  _
                $region126: #{detect_forward.1} parent=123 // loop_header
                  %s1096 = sphi 0, %s1100
                  %p1097 = scmp.ge.s32.totalorder %s1096, 1
                  %s1101 = sphi %s1068, %s1068
                  %s1102 = sphi %s1073, %s1073
                $region127: #{detect_forward.1} parent=123 // loop_header_branch
                  %1099 = sbr.rel (%p1097) target = $region131
                $region128: #{detect_forward.1} parent=123 // loop_body
                  %v1103 = vld [vmem:[%s1101] sm:$0xff]
                  %1104 = vst [vmem:[%s1102] sm:$0xff] %v1103
                  %v1105 = vld [vmem:[%s1101 + $0x8] sm:$0xff]
                  %1106 = vst [vmem:[%s1102 + $0x10] sm:$0xff] %v1105
                $region129: #{detect_forward.1} parent=123 // loop_footer
                  %s1100 = sadd.s32 1, %s1096
                $region130: #{detect_forward.1} parent=123 // loop_footer_branch
                  %1095 = sbr.rel target = $region126
                $region131: #{detect_forward.1} parent=123 // loop_exit
                  _
              $region124: #{detect_forward.1} parent=108 // pred_fallthru
                _
              // Predicated region
              $region132: #{detect_forward.1} parent=108 // pred_check
                _
              $region133: #{detect_forward.1} parent=108 // pred_check_branch
                %1108 = sbr.rel target = $region135
              $region134: #{detect_forward.1} parent=108 // pred_region
                _
              $region135: #{detect_forward.1} parent=108 // pred_fallthru
                _
            $region109: #{detect_forward.1} parent=104 // pred_fallthru
              _
            // Predicated region
            $region110: #{detect_forward.1} parent=104 // pred_check
              _
            $region111: #{detect_forward.1} parent=104 // pred_check_branch
              %1079 = sbr.rel target = $region113
            $region112: #{detect_forward.1} parent=104 // pred_region
              loop: start=0, step=1, limit=1
              $region114: #{detect_forward.1} parent=112 // loop_pre_header
                _
              $region115: #{detect_forward.1} parent=112 // loop_header
                %s1082 = sphi 0, %s1086
                %p1083 = scmp.ge.s32.totalorder %s1082, 1
                %s1087 = sphi %s1068, %s1068
                %s1088 = sphi %s1073, %s1073
              $region116: #{detect_forward.1} parent=112 // loop_header_branch
                %1085 = sbr.rel (%p1083) target = $region120
              $region117: #{detect_forward.1} parent=112 // loop_body
                %v1089 = vld [vmem:[%s1087] sm:$0xff]
                %1090 = vst [vmem:[%s1088] sm:$0xff] %v1089
                %v1091 = vld [vmem:[%s1087 + $0x8] sm:$0xff]
                %1092 = vst [vmem:[%s1088 + $0x10] sm:$0xff] %v1091
              $region118: #{detect_forward.1} parent=112 // loop_footer
                %s1086 = sadd.s32 1, %s1082
              $region119: #{detect_forward.1} parent=112 // loop_footer_branch
                %1081 = sbr.rel target = $region115
              $region120: #{detect_forward.1} parent=112 // loop_exit
                _
            $region113: #{detect_forward.1} parent=104 // pred_fallthru
              _
          $region105: #{detect_forward.1} parent=100 // pred_fallthru
            _
          %1109 = vnop
        $region101: #{detect_forward.1} parent=76 // pred_fallthru
          _
      $region77: #{detect_forward.1} parent=5 // pred_fallthru
        _
      %p1110 = scmp.le.s32.totalorder 2, %s14
      // Predicated region
      $region136: #{detect_forward.1} parent=5 // pred_check
        %p1111 = pneg %p1110
      $region137: #{detect_forward.1} parent=5 // pred_check_branch
        %1113 = sbr.rel (%p1111) target = $region139
      $region138: #{detect_forward.1} parent=5 // pred_region
        %s1114 = ssub.s32 %s14, 2
        // Predicated region
        $region140: #{detect_forward.1} parent=138 // pred_check
          %p1115 = pneg %p153
        $region141: #{detect_forward.1} parent=138 // pred_check_branch
          %1117 = sbr.rel (%p1115) target = $region143
        $region142: #{detect_forward.1} parent=138 // pred_region
          %s1118 = sand.u32 %s138, 1
          %s1119 = sand.u32 %s138, 1
          %s1120 = smul.addr %s1119, 16
          %s1121 = scalar_lea.vmem [#allocation10], %s1120
        $region143: #{detect_forward.1} parent=138 // pred_fallthru
          _
      $region139: #{detect_forward.1} parent=5 // pred_fallthru
        _
    $region6: #{detect_forward.1} parent=1 // loop_footer
      %s18 = sadd.s32 1, %s14
    $region7: #{detect_forward.1} parent=1 // loop_footer_branch
      %13 = sbr.rel target = $region3
    $region8: #{detect_forward.1} parent=1 // loop_exit
      _
    %1122 = vsyncpa [#allocation3], 1
    %s1123 = scalar_lea.sflag [#allocation3], 1
    %1124 = vsyncpa %s1123, 1
    %1125 = vsyncpa [#allocation5], 1
    %1126 = vsyncpa [#allocation8], 1

</llo_original>
